<compile_context>
chip_gen: v6e
topology: v6e:2x2x1
jax: 0.10.0
libtpu: 0.0.40
codegen_flags: <defaults>
</compile_context>

<pallas_src>
import jax
import jax.numpy as jnp
from jax import lax
from jax.experimental import pallas as pl
from jax.experimental.pallas import tpu as pltpu


def _is_pow2(n: int) -> bool:
    return n > 0 and (n & (n - 1)) == 0


def _make_attention_kernel(H, W, images_per_step, compute_dtype):
    HW = H * W
    L = images_per_step * HW                       # lanes per grid step
    taps = [(ky - 1, kx - 1) for ky in range(3) for kx in range(3)]

    def lane_coords():
        # Within-image (y, x) coordinate of every lane, computed once per step
        # from a lane iota (cheap bit ops for power-of-two H/W).
        lane = lax.broadcasted_iota(jnp.int32, (1, L), 1)
        p = jnp.bitwise_and(lane, HW - 1) if _is_pow2(HW) else lane % HW
        if _is_pow2(W):
            yy = jnp.right_shift(p, W.bit_length() - 1)
            xx = jnp.bitwise_and(p, W - 1)
        else:
            yy = p // W
            xx = p % W
        return yy, xx

    def make_masks(yy, xx):
        # f32 validity masks for the 8 non-center taps (center is always valid).
        masks = []
        for dy, dx in taps:
            if dy == 0 and dx == 0:
                masks.append(None)
            else:
                valid = ((yy + dy >= 0) & (yy + dy < H) &
                         (xx + dx >= 0) & (xx + dx < W))
                masks.append(valid.astype(jnp.float32))
        return masks

    def conv3x3(x32, masks, w_ref, b):
        # x32: (C, L) f32, w_ref: (9, Co, C) compute_dtype, b: (Co, 1) f32
        co = w_ref.shape[1]
        acc = jnp.zeros((co, L), jnp.float32)
        for tap, (dy, dx) in enumerate(taps):
            s = dy * W + dx
            if s == 0:
                xt = x32                            # center tap: no roll / mask
            else:
                # out[:, p] = x[:, p + s]  ==  roll by (-s) mod L  (XLU vrot);
                # masks zero every lane whose source crosses an image border.
                xt = pltpu.roll(x32, (-s) % L, axis=1) * masks[tap]
            acc = acc + jnp.dot(w_ref[tap], xt.astype(compute_dtype),
                                preferred_element_type=jnp.float32)
        return acc + b

    def kernel(x_ref, w1_ref, b1_ref, w2_ref, b2_ref, w3_ref, b3_ref, o_ref):
        # x_ref: (Cin, L) compute_dtype (bf16 halves the HBM->VMEM DMA)
        # o_ref: (4, L) f32, lane-dense
        yy, xx = lane_coords()
        masks = make_masks(yy, xx)                  # hoisted: shared by both convs
        x32 = x_ref[...].astype(jnp.float32)
        h1 = jnp.maximum(conv3x3(x32, masks, w1_ref, b1_ref[...]), 0.0)
        h2 = jnp.maximum(conv3x3(h1, masks, w2_ref, b2_ref[...]), 0.0)
        out = jnp.dot(w3_ref[...], h2.astype(compute_dtype),
                      preferred_element_type=jnp.float32) + b3_ref[...]
        o_ref[...] = jax.nn.sigmoid(out)

    return kernel


def attention_forward(x_nchw, params, *, compute_dtype=jnp.bfloat16,
                      images_per_step=None):
    """x_nchw: (N, Cin, H, W) f32 -> (N, 4, H, W) f32.

    compute_dtype: dtype of the GEMM operands (bf16 recommended on v6e/v7x,
    f32 for v5e-friendly elementwise / strict validation). Accumulation and all
    elementwise math are always f32.
    """
    x = x_nchw.astype(jnp.float32)
    N, Cin, H, W = x.shape
    HW = H * W
    Co = params["w1"].shape[-1]

    # --- choose images per grid step (lane folding) -------------------------
    if images_per_step is None:
        # Aim for exactly 2 grid steps so both v7x TensorCores get work; on
        # v5e/v6e the second step is negligible overhead.
        images_per_step = N // 2 if (N >= 2 and N % 2 == 0) else N
    G = images_per_step
    if N % G != 0 or ((G * HW) % 128 != 0 and G != N):
        G = N                                       # full-extent block is always legal
    steps = N // G
    L = G * HW

    # --- layout plumbing (wrapper-side, tiny) --------------------------------
    # (N, Cin, H, W) -> (Cin, N*HW): lane index = n*HW + y*W + x.
    x_lanes = (x.reshape(N, Cin, HW).transpose(1, 0, 2)
                .reshape(Cin, N * HW).astype(compute_dtype))

    # HWIO weights -> per-tap GEMM layout (9, Co, C): [ky*3+kx, o, c].
    w1k = jnp.transpose(params["w1"], (0, 1, 3, 2)).reshape(9, Co, Cin)
    w2k = jnp.transpose(params["w2"], (0, 1, 3, 2)).reshape(9, Co, Co)
    w1k = w1k.astype(compute_dtype)
    w2k = w2k.astype(compute_dtype)
    w3k = params["w3"].T.astype(compute_dtype)                  # (4, Co)
    b1 = params["b1"].reshape(Co, 1).astype(jnp.float32)
    b2 = params["b2"].reshape(Co, 1).astype(jnp.float32)
    b3 = params["b3"].reshape(4, 1).astype(jnp.float32)

    kernel = _make_attention_kernel(H, W, G, compute_dtype)

    out_lanes = pl.pallas_call(
        kernel,
        out_shape=jax.ShapeDtypeStruct((4, N * HW), jnp.float32),
        grid=(steps,),
        in_specs=[
            pl.BlockSpec((Cin, L), lambda i: (0, i)),
            pl.BlockSpec((9, Co, Cin), lambda i: (0, 0, 0)),
            pl.BlockSpec((Co, 1), lambda i: (0, 0)),
            pl.BlockSpec((9, Co, Co), lambda i: (0, 0, 0)),
            pl.BlockSpec((Co, 1), lambda i: (0, 0)),
            pl.BlockSpec((4, Co), lambda i: (0, 0)),
            pl.BlockSpec((4, 1), lambda i: (0, 0)),
        ],
        out_specs=pl.BlockSpec((4, L), lambda i: (0, i)),
        compiler_params=pltpu.CompilerParams(
            dimension_semantics=("parallel",),
            # Toy sizes need <1 MiB; declare a modest scoped-VMEM budget so the
            # auto-pipeline stays double-buffered when HW / Cin / G grow
            # (v7x only has 64 MiB physical VMEM).
            vmem_limit_bytes=32 * 1024 * 1024),
    )(x_lanes, w1k, b1, w2k, b2, w3k, b3)

    # (4, N*HW) -> (N, 4, H, W)
    return out_lanes.reshape(4, N, HW).transpose(1, 0, 2).reshape(N, 4, H, W)


def init_params(key, in_channels):
    """Deterministic parameter init (shapes match the PyTorch module)."""
    co = in_channels // 2
    k1, k2, k3, k4, k5, k6 = jax.random.split(key, 6)
    scale = 0.1
    return {
        # HWIO weights (equivalent to torch OIHW transposed (2,3,1,0))
        "w1": scale * jax.random.normal(k1, (3, 3, in_channels, co), jnp.float32),
        "b1": scale * jax.random.normal(k2, (co,), jnp.float32),
        "w2": scale * jax.random.normal(k3, (3, 3, co, co), jnp.float32),
        "b2": scale * jax.random.normal(k4, (co,), jnp.float32),
        "w3": scale * jax.random.normal(k5, (co, 4), jnp.float32),
        "b3": scale * jax.random.normal(k6, (4,), jnp.float32),
    }


def reference_forward(x_nchw, p):
    """Pure-JAX reference (lax conv) for correctness checking."""
    x = jnp.transpose(x_nchw, (0, 2, 3, 1))
    dn = ("NHWC", "HWIO", "NHWC")
    y = lax.conv_general_dilated(x, p["w1"], (1, 1), "SAME",
                                 dimension_numbers=dn) + p["b1"]
    y = jax.nn.relu(y)
    y = lax.conv_general_dilated(y, p["w2"], (1, 1), "SAME",
                                 dimension_numbers=dn) + p["b2"]
    y = jax.nn.relu(y)
    y = jnp.einsum("nhwc,co->nhwo", y, p["w3"]) + p["b3"]
    y = jax.nn.sigmoid(y)
    return jnp.transpose(y, (0, 3, 1, 2))


if __name__ == "__main__":
    key = jax.random.PRNGKey(0)
    kx, kp = jax.random.split(key)

    N, Cin, H, W = 2, 4, 16, 16
    x = jax.random.normal(kx, (N, Cin, H, W), jnp.float32)
    params = init_params(kp, Cin)

    ref = reference_forward(x, params)

    # f32 GEMM path: strict validation (and the v5e-preferred configuration).
    out_f32 = jax.block_until_ready(
        attention_forward(x, params, compute_dtype=jnp.float32))
    assert out_f32.shape == (N, 4, H, W), out_f32.shape
    assert jnp.allclose(out_f32, ref, atol=1e-5, rtol=1e-5), float(
        jnp.max(jnp.abs(out_f32 - ref)))

    # bf16 GEMM path (native MXU rate on v6e/v7x): f32 accumulation, relaxed tol.
    out_bf16 = jax.block_until_ready(
        attention_forward(x, params, compute_dtype=jnp.bfloat16))
    assert out_bf16.shape == (N, 4, H, W), out_bf16.shape
    assert jnp.allclose(out_bf16, ref, atol=3e-2, rtol=3e-2), float(
        jnp.max(jnp.abs(out_bf16 - ref)))

    print("KERNEL_OK")
</pallas_src>

<mosaic_0001>
module attributes {stable_mosaic.version = 11 : i64} {
  func.func @kernel(%arg0: i32, %arg1: memref<4x256xf32, #tpu.memory_space<vmem>>, %arg2: memref<9x2x4xf32, #tpu.memory_space<vmem>>, %arg3: memref<2x1xf32, #tpu.memory_space<vmem>>, %arg4: memref<9x2x2xf32, #tpu.memory_space<vmem>>, %arg5: memref<2x1xf32, #tpu.memory_space<vmem>>, %arg6: memref<4x2xf32, #tpu.memory_space<vmem>>, %arg7: memref<4x1xf32, #tpu.memory_space<vmem>>, %arg8: memref<4x256xf32, #tpu.memory_space<vmem>>) attributes {dimension_semantics = [#tpu.dimension_semantics<parallel>], iteration_bounds = array<i64: 2>, scalar_prefetch = 0 : i64, scratch_operands = 0 : i64, tpu.core_type = #tpu.core_type<tc>, window_params = [{transform_indices = @transform_0, window_bounds = array<i64: 4, 256>}, {pipeline_mode = #tpu.pipeline_mode<synchronous>, transform_indices = @transform_1, window_bounds = array<i64: 9, 2, 4>}, {pipeline_mode = #tpu.pipeline_mode<synchronous>, transform_indices = @transform_2, window_bounds = array<i64: 2, 1>}, {pipeline_mode = #tpu.pipeline_mode<synchronous>, transform_indices = @transform_3, window_bounds = array<i64: 9, 2, 2>}, {pipeline_mode = #tpu.pipeline_mode<synchronous>, transform_indices = @transform_4, window_bounds = array<i64: 2, 1>}, {pipeline_mode = #tpu.pipeline_mode<synchronous>, transform_indices = @transform_5, window_bounds = array<i64: 4, 2>}, {pipeline_mode = #tpu.pipeline_mode<synchronous>, transform_indices = @transform_6, window_bounds = array<i64: 4, 1>}, {transform_indices = @transform_7, window_bounds = array<i64: 4, 256>}]} {
    %0 = tpu.iota {dimensions = array<i32: 1>} : vector<1x256xi32>
    %c255_i32 = arith.constant 255 : i32
    %1 = vector.broadcast %c255_i32 : i32 to vector<1x256xi32>
    %2 = arith.andi %0, %1 : vector<1x256xi32>
    %c4_i32 = arith.constant 4 : i32
    %3 = vector.broadcast %c4_i32 : i32 to vector<1x256xi32>
    %4 = arith.shrsi %2, %3 : vector<1x256xi32>
    %c15_i32 = arith.constant 15 : i32
    %5 = vector.broadcast %c15_i32 : i32 to vector<1x256xi32>
    %6 = arith.andi %2, %5 : vector<1x256xi32>
    %c-1_i32 = arith.constant -1 : i32
    %7 = vector.broadcast %c-1_i32 : i32 to vector<1x256xi32>
    %8 = arith.addi %4, %7 : vector<1x256xi32>
    %c0_i32 = arith.constant 0 : i32
    %9 = vector.broadcast %c0_i32 : i32 to vector<1x256xi32>
    %10 = arith.cmpi sge, %8, %9 : vector<1x256xi32>
    %c-1_i32_0 = arith.constant -1 : i32
    %11 = vector.broadcast %c-1_i32_0 : i32 to vector<1x256xi32>
    %12 = arith.addi %4, %11 : vector<1x256xi32>
    %c16_i32 = arith.constant 16 : i32
    %13 = vector.broadcast %c16_i32 : i32 to vector<1x256xi32>
    %14 = arith.cmpi slt, %12, %13 : vector<1x256xi32>
    %15 = arith.andi %10, %14 : vector<1x256xi1>
    %c-1_i32_1 = arith.constant -1 : i32
    %16 = vector.broadcast %c-1_i32_1 : i32 to vector<1x256xi32>
    %17 = arith.addi %6, %16 : vector<1x256xi32>
    %c0_i32_2 = arith.constant 0 : i32
    %18 = vector.broadcast %c0_i32_2 : i32 to vector<1x256xi32>
    %19 = arith.cmpi sge, %17, %18 : vector<1x256xi32>
    %20 = arith.andi %15, %19 : vector<1x256xi1>
    %c-1_i32_3 = arith.constant -1 : i32
    %21 = vector.broadcast %c-1_i32_3 : i32 to vector<1x256xi32>
    %22 = arith.addi %6, %21 : vector<1x256xi32>
    %c16_i32_4 = arith.constant 16 : i32
    %23 = vector.broadcast %c16_i32_4 : i32 to vector<1x256xi32>
    %24 = arith.cmpi slt, %22, %23 : vector<1x256xi32>
    %25 = arith.andi %20, %24 : vector<1x256xi1>
    %26 = arith.extui %25 : vector<1x256xi1> to vector<1x256xi32>
    %27 = arith.sitofp %26 : vector<1x256xi32> to vector<1x256xf32>
    %c-1_i32_5 = arith.constant -1 : i32
    %28 = vector.broadcast %c-1_i32_5 : i32 to vector<1x256xi32>
    %29 = arith.addi %4, %28 : vector<1x256xi32>
    %c0_i32_6 = arith.constant 0 : i32
    %30 = vector.broadcast %c0_i32_6 : i32 to vector<1x256xi32>
    %31 = arith.cmpi sge, %29, %30 : vector<1x256xi32>
    %c-1_i32_7 = arith.constant -1 : i32
    %32 = vector.broadcast %c-1_i32_7 : i32 to vector<1x256xi32>
    %33 = arith.addi %4, %32 : vector<1x256xi32>
    %c16_i32_8 = arith.constant 16 : i32
    %34 = vector.broadcast %c16_i32_8 : i32 to vector<1x256xi32>
    %35 = arith.cmpi slt, %33, %34 : vector<1x256xi32>
    %36 = arith.andi %31, %35 : vector<1x256xi1>
    %c0_i32_9 = arith.constant 0 : i32
    %37 = vector.broadcast %c0_i32_9 : i32 to vector<1x256xi32>
    %38 = arith.addi %6, %37 : vector<1x256xi32>
    %c0_i32_10 = arith.constant 0 : i32
    %39 = vector.broadcast %c0_i32_10 : i32 to vector<1x256xi32>
    %40 = arith.cmpi sge, %38, %39 : vector<1x256xi32>
    %41 = arith.andi %36, %40 : vector<1x256xi1>
    %c0_i32_11 = arith.constant 0 : i32
    %42 = vector.broadcast %c0_i32_11 : i32 to vector<1x256xi32>
    %43 = arith.addi %6, %42 : vector<1x256xi32>
    %c16_i32_12 = arith.constant 16 : i32
    %44 = vector.broadcast %c16_i32_12 : i32 to vector<1x256xi32>
    %45 = arith.cmpi slt, %43, %44 : vector<1x256xi32>
    %46 = arith.andi %41, %45 : vector<1x256xi1>
    %47 = arith.extui %46 : vector<1x256xi1> to vector<1x256xi32>
    %48 = arith.sitofp %47 : vector<1x256xi32> to vector<1x256xf32>
    %c-1_i32_13 = arith.constant -1 : i32
    %49 = vector.broadcast %c-1_i32_13 : i32 to vector<1x256xi32>
    %50 = arith.addi %4, %49 : vector<1x256xi32>
    %c0_i32_14 = arith.constant 0 : i32
    %51 = vector.broadcast %c0_i32_14 : i32 to vector<1x256xi32>
    %52 = arith.cmpi sge, %50, %51 : vector<1x256xi32>
    %c-1_i32_15 = arith.constant -1 : i32
    %53 = vector.broadcast %c-1_i32_15 : i32 to vector<1x256xi32>
    %54 = arith.addi %4, %53 : vector<1x256xi32>
    %c16_i32_16 = arith.constant 16 : i32
    %55 = vector.broadcast %c16_i32_16 : i32 to vector<1x256xi32>
    %56 = arith.cmpi slt, %54, %55 : vector<1x256xi32>
    %57 = arith.andi %52, %56 : vector<1x256xi1>
    %c1_i32 = arith.constant 1 : i32
    %58 = vector.broadcast %c1_i32 : i32 to vector<1x256xi32>
    %59 = arith.addi %6, %58 : vector<1x256xi32>
    %c0_i32_17 = arith.constant 0 : i32
    %60 = vector.broadcast %c0_i32_17 : i32 to vector<1x256xi32>
    %61 = arith.cmpi sge, %59, %60 : vector<1x256xi32>
    %62 = arith.andi %57, %61 : vector<1x256xi1>
    %c1_i32_18 = arith.constant 1 : i32
    %63 = vector.broadcast %c1_i32_18 : i32 to vector<1x256xi32>
    %64 = arith.addi %6, %63 : vector<1x256xi32>
    %c16_i32_19 = arith.constant 16 : i32
    %65 = vector.broadcast %c16_i32_19 : i32 to vector<1x256xi32>
    %66 = arith.cmpi slt, %64, %65 : vector<1x256xi32>
    %67 = arith.andi %62, %66 : vector<1x256xi1>
    %68 = arith.extui %67 : vector<1x256xi1> to vector<1x256xi32>
    %69 = arith.sitofp %68 : vector<1x256xi32> to vector<1x256xf32>
    %c0_i32_20 = arith.constant 0 : i32
    %70 = vector.broadcast %c0_i32_20 : i32 to vector<1x256xi32>
    %71 = arith.addi %4, %70 : vector<1x256xi32>
    %c0_i32_21 = arith.constant 0 : i32
    %72 = vector.broadcast %c0_i32_21 : i32 to vector<1x256xi32>
    %73 = arith.cmpi sge, %71, %72 : vector<1x256xi32>
    %c0_i32_22 = arith.constant 0 : i32
    %74 = vector.broadcast %c0_i32_22 : i32 to vector<1x256xi32>
    %75 = arith.addi %4, %74 : vector<1x256xi32>
    %c16_i32_23 = arith.constant 16 : i32
    %76 = vector.broadcast %c16_i32_23 : i32 to vector<1x256xi32>
    %77 = arith.cmpi slt, %75, %76 : vector<1x256xi32>
    %78 = arith.andi %73, %77 : vector<1x256xi1>
    %c-1_i32_24 = arith.constant -1 : i32
    %79 = vector.broadcast %c-1_i32_24 : i32 to vector<1x256xi32>
    %80 = arith.addi %6, %79 : vector<1x256xi32>
    %c0_i32_25 = arith.constant 0 : i32
    %81 = vector.broadcast %c0_i32_25 : i32 to vector<1x256xi32>
    %82 = arith.cmpi sge, %80, %81 : vector<1x256xi32>
    %83 = arith.andi %78, %82 : vector<1x256xi1>
    %c-1_i32_26 = arith.constant -1 : i32
    %84 = vector.broadcast %c-1_i32_26 : i32 to vector<1x256xi32>
    %85 = arith.addi %6, %84 : vector<1x256xi32>
    %c16_i32_27 = arith.constant 16 : i32
    %86 = vector.broadcast %c16_i32_27 : i32 to vector<1x256xi32>
    %87 = arith.cmpi slt, %85, %86 : vector<1x256xi32>
    %88 = arith.andi %83, %87 : vector<1x256xi1>
    %89 = arith.extui %88 : vector<1x256xi1> to vector<1x256xi32>
    %90 = arith.sitofp %89 : vector<1x256xi32> to vector<1x256xf32>
    %c0_i32_28 = arith.constant 0 : i32
    %91 = vector.broadcast %c0_i32_28 : i32 to vector<1x256xi32>
    %92 = arith.addi %4, %91 : vector<1x256xi32>
    %c0_i32_29 = arith.constant 0 : i32
    %93 = vector.broadcast %c0_i32_29 : i32 to vector<1x256xi32>
    %94 = arith.cmpi sge, %92, %93 : vector<1x256xi32>
    %c0_i32_30 = arith.constant 0 : i32
    %95 = vector.broadcast %c0_i32_30 : i32 to vector<1x256xi32>
    %96 = arith.addi %4, %95 : vector<1x256xi32>
    %c16_i32_31 = arith.constant 16 : i32
    %97 = vector.broadcast %c16_i32_31 : i32 to vector<1x256xi32>
    %98 = arith.cmpi slt, %96, %97 : vector<1x256xi32>
    %99 = arith.andi %94, %98 : vector<1x256xi1>
    %c1_i32_32 = arith.constant 1 : i32
    %100 = vector.broadcast %c1_i32_32 : i32 to vector<1x256xi32>
    %101 = arith.addi %6, %100 : vector<1x256xi32>
    %c0_i32_33 = arith.constant 0 : i32
    %102 = vector.broadcast %c0_i32_33 : i32 to vector<1x256xi32>
    %103 = arith.cmpi sge, %101, %102 : vector<1x256xi32>
    %104 = arith.andi %99, %103 : vector<1x256xi1>
    %c1_i32_34 = arith.constant 1 : i32
    %105 = vector.broadcast %c1_i32_34 : i32 to vector<1x256xi32>
    %106 = arith.addi %6, %105 : vector<1x256xi32>
    %c16_i32_35 = arith.constant 16 : i32
    %107 = vector.broadcast %c16_i32_35 : i32 to vector<1x256xi32>
    %108 = arith.cmpi slt, %106, %107 : vector<1x256xi32>
    %109 = arith.andi %104, %108 : vector<1x256xi1>
    %110 = arith.extui %109 : vector<1x256xi1> to vector<1x256xi32>
    %111 = arith.sitofp %110 : vector<1x256xi32> to vector<1x256xf32>
    %c1_i32_36 = arith.constant 1 : i32
    %112 = vector.broadcast %c1_i32_36 : i32 to vector<1x256xi32>
    %113 = arith.addi %4, %112 : vector<1x256xi32>
    %c0_i32_37 = arith.constant 0 : i32
    %114 = vector.broadcast %c0_i32_37 : i32 to vector<1x256xi32>
    %115 = arith.cmpi sge, %113, %114 : vector<1x256xi32>
    %c1_i32_38 = arith.constant 1 : i32
    %116 = vector.broadcast %c1_i32_38 : i32 to vector<1x256xi32>
    %117 = arith.addi %4, %116 : vector<1x256xi32>
    %c16_i32_39 = arith.constant 16 : i32
    %118 = vector.broadcast %c16_i32_39 : i32 to vector<1x256xi32>
    %119 = arith.cmpi slt, %117, %118 : vector<1x256xi32>
    %120 = arith.andi %115, %119 : vector<1x256xi1>
    %c-1_i32_40 = arith.constant -1 : i32
    %121 = vector.broadcast %c-1_i32_40 : i32 to vector<1x256xi32>
    %122 = arith.addi %6, %121 : vector<1x256xi32>
    %c0_i32_41 = arith.constant 0 : i32
    %123 = vector.broadcast %c0_i32_41 : i32 to vector<1x256xi32>
    %124 = arith.cmpi sge, %122, %123 : vector<1x256xi32>
    %125 = arith.andi %120, %124 : vector<1x256xi1>
    %c-1_i32_42 = arith.constant -1 : i32
    %126 = vector.broadcast %c-1_i32_42 : i32 to vector<1x256xi32>
    %127 = arith.addi %6, %126 : vector<1x256xi32>
    %c16_i32_43 = arith.constant 16 : i32
    %128 = vector.broadcast %c16_i32_43 : i32 to vector<1x256xi32>
    %129 = arith.cmpi slt, %127, %128 : vector<1x256xi32>
    %130 = arith.andi %125, %129 : vector<1x256xi1>
    %131 = arith.extui %130 : vector<1x256xi1> to vector<1x256xi32>
    %132 = arith.sitofp %131 : vector<1x256xi32> to vector<1x256xf32>
    %c1_i32_44 = arith.constant 1 : i32
    %133 = vector.broadcast %c1_i32_44 : i32 to vector<1x256xi32>
    %134 = arith.addi %4, %133 : vector<1x256xi32>
    %c0_i32_45 = arith.constant 0 : i32
    %135 = vector.broadcast %c0_i32_45 : i32 to vector<1x256xi32>
    %136 = arith.cmpi sge, %134, %135 : vector<1x256xi32>
    %c1_i32_46 = arith.constant 1 : i32
    %137 = vector.broadcast %c1_i32_46 : i32 to vector<1x256xi32>
    %138 = arith.addi %4, %137 : vector<1x256xi32>
    %c16_i32_47 = arith.constant 16 : i32
    %139 = vector.broadcast %c16_i32_47 : i32 to vector<1x256xi32>
    %140 = arith.cmpi slt, %138, %139 : vector<1x256xi32>
    %141 = arith.andi %136, %140 : vector<1x256xi1>
    %c0_i32_48 = arith.constant 0 : i32
    %142 = vector.broadcast %c0_i32_48 : i32 to vector<1x256xi32>
    %143 = arith.addi %6, %142 : vector<1x256xi32>
    %c0_i32_49 = arith.constant 0 : i32
    %144 = vector.broadcast %c0_i32_49 : i32 to vector<1x256xi32>
    %145 = arith.cmpi sge, %143, %144 : vector<1x256xi32>
    %146 = arith.andi %141, %145 : vector<1x256xi1>
    %c0_i32_50 = arith.constant 0 : i32
    %147 = vector.broadcast %c0_i32_50 : i32 to vector<1x256xi32>
    %148 = arith.addi %6, %147 : vector<1x256xi32>
    %c16_i32_51 = arith.constant 16 : i32
    %149 = vector.broadcast %c16_i32_51 : i32 to vector<1x256xi32>
    %150 = arith.cmpi slt, %148, %149 : vector<1x256xi32>
    %151 = arith.andi %146, %150 : vector<1x256xi1>
    %152 = arith.extui %151 : vector<1x256xi1> to vector<1x256xi32>
    %153 = arith.sitofp %152 : vector<1x256xi32> to vector<1x256xf32>
    %c1_i32_52 = arith.constant 1 : i32
    %154 = vector.broadcast %c1_i32_52 : i32 to vector<1x256xi32>
    %155 = arith.addi %4, %154 : vector<1x256xi32>
    %c0_i32_53 = arith.constant 0 : i32
    %156 = vector.broadcast %c0_i32_53 : i32 to vector<1x256xi32>
    %157 = arith.cmpi sge, %155, %156 : vector<1x256xi32>
    %c1_i32_54 = arith.constant 1 : i32
    %158 = vector.broadcast %c1_i32_54 : i32 to vector<1x256xi32>
    %159 = arith.addi %4, %158 : vector<1x256xi32>
    %c16_i32_55 = arith.constant 16 : i32
    %160 = vector.broadcast %c16_i32_55 : i32 to vector<1x256xi32>
    %161 = arith.cmpi slt, %159, %160 : vector<1x256xi32>
    %162 = arith.andi %157, %161 : vector<1x256xi1>
    %c1_i32_56 = arith.constant 1 : i32
    %163 = vector.broadcast %c1_i32_56 : i32 to vector<1x256xi32>
    %164 = arith.addi %6, %163 : vector<1x256xi32>
    %c0_i32_57 = arith.constant 0 : i32
    %165 = vector.broadcast %c0_i32_57 : i32 to vector<1x256xi32>
    %166 = arith.cmpi sge, %164, %165 : vector<1x256xi32>
    %167 = arith.andi %162, %166 : vector<1x256xi1>
    %c1_i32_58 = arith.constant 1 : i32
    %168 = vector.broadcast %c1_i32_58 : i32 to vector<1x256xi32>
    %169 = arith.addi %6, %168 : vector<1x256xi32>
    %c16_i32_59 = arith.constant 16 : i32
    %170 = vector.broadcast %c16_i32_59 : i32 to vector<1x256xi32>
    %171 = arith.cmpi slt, %169, %170 : vector<1x256xi32>
    %172 = arith.andi %167, %171 : vector<1x256xi1>
    %173 = arith.extui %172 : vector<1x256xi1> to vector<1x256xi32>
    %174 = arith.sitofp %173 : vector<1x256xi32> to vector<1x256xf32>
    %c0 = arith.constant 0 : index
    %c0_60 = arith.constant 0 : index
    %175 = vector.load %arg1[%c0, %c0_60] : memref<4x256xf32, #tpu.memory_space<vmem>>, vector<4x256xf32>
    %c0_61 = arith.constant 0 : index
    %c0_62 = arith.constant 0 : index
    %176 = vector.load %arg3[%c0_61, %c0_62] : memref<2x1xf32, #tpu.memory_space<vmem>>, vector<2x1xf32>
    %cst = arith.constant 0.000000e+00 : f32
    %177 = vector.broadcast %cst : f32 to vector<2x256xf32>
    %c17_i32 = arith.constant 17 : i32
    %178 = tpu.dynamic_rotate %175 by %c17_i32 dim 1 : vector<4x256xf32>, i32 -> vector<4x256xf32>
    %179 = vector.broadcast %27 : vector<1x256xf32> to vector<4x256xf32>
    %180 = arith.mulf %178, %179 : vector<4x256xf32>
    %c0_63 = arith.constant 0 : index
    %c0_64 = arith.constant 0 : index
    %c0_65 = arith.constant 0 : index
    %181 = vector.load %arg2[%c0_63, %c0_64, %c0_65] : memref<9x2x4xf32, #tpu.memory_space<vmem>>, vector<1x2x4xf32>
    %182 = vector.shape_cast %181 : vector<1x2x4xf32> to vector<2x4xf32>
    %cst_66 = arith.constant dense<0.000000e+00> : vector<2x256xf32>
    %183 = tpu.matmul %182, %180, %cst_66 {dimension_numbers = #tpu.dot_dimension_numbers<[1], [0], [0], [1], [0, 0, 1, 1], [], []>} : vector<2x4xf32>, vector<4x256xf32>, vector<2x256xf32> -> vector<2x256xf32>
    %184 = arith.addf %177, %183 : vector<2x256xf32>
    %c16_i32_67 = arith.constant 16 : i32
    %185 = tpu.dynamic_rotate %175 by %c16_i32_67 dim 1 : vector<4x256xf32>, i32 -> vector<4x256xf32>
    %186 = vector.broadcast %48 : vector<1x256xf32> to vector<4x256xf32>
    %187 = arith.mulf %185, %186 : vector<4x256xf32>
    %c1 = arith.constant 1 : index
    %c0_68 = arith.constant 0 : index
    %c0_69 = arith.constant 0 : index
    %188 = vector.load %arg2[%c1, %c0_68, %c0_69] : memref<9x2x4xf32, #tpu.memory_space<vmem>>, vector<1x2x4xf32>
    %189 = vector.shape_cast %188 : vector<1x2x4xf32> to vector<2x4xf32>
    %cst_70 = arith.constant dense<0.000000e+00> : vector<2x256xf32>
    %190 = tpu.matmul %189, %187, %cst_70 {dimension_numbers = #tpu.dot_dimension_numbers<[1], [0], [0], [1], [0, 0, 1, 1], [], []>} : vector<2x4xf32>, vector<4x256xf32>, vector<2x256xf32> -> vector<2x256xf32>
    %191 = arith.addf %184, %190 : vector<2x256xf32>
    %c15_i32_71 = arith.constant 15 : i32
    %192 = tpu.dynamic_rotate %175 by %c15_i32_71 dim 1 : vector<4x256xf32>, i32 -> vector<4x256xf32>
    %193 = vector.broadcast %69 : vector<1x256xf32> to vector<4x256xf32>
    %194 = arith.mulf %192, %193 : vector<4x256xf32>
    %c2 = arith.constant 2 : index
    %c0_72 = arith.constant 0 : index
    %c0_73 = arith.constant 0 : index
    %195 = vector.load %arg2[%c2, %c0_72, %c0_73] : memref<9x2x4xf32, #tpu.memory_space<vmem>>, vector<1x2x4xf32>
    %196 = vector.shape_cast %195 : vector<1x2x4xf32> to vector<2x4xf32>
    %cst_74 = arith.constant dense<0.000000e+00> : vector<2x256xf32>
    %197 = tpu.matmul %196, %194, %cst_74 {dimension_numbers = #tpu.dot_dimension_numbers<[1], [0], [0], [1], [0, 0, 1, 1], [], []>} : vector<2x4xf32>, vector<4x256xf32>, vector<2x256xf32> -> vector<2x256xf32>
    %198 = arith.addf %191, %197 : vector<2x256xf32>
    %c1_i32_75 = arith.constant 1 : i32
    %199 = tpu.dynamic_rotate %175 by %c1_i32_75 dim 1 : vector<4x256xf32>, i32 -> vector<4x256xf32>
    %200 = vector.broadcast %90 : vector<1x256xf32> to vector<4x256xf32>
    %201 = arith.mulf %199, %200 : vector<4x256xf32>
    %c3 = arith.constant 3 : index
    %c0_76 = arith.constant 0 : index
    %c0_77 = arith.constant 0 : index
    %202 = vector.load %arg2[%c3, %c0_76, %c0_77] : memref<9x2x4xf32, #tpu.memory_space<vmem>>, vector<1x2x4xf32>
    %203 = vector.shape_cast %202 : vector<1x2x4xf32> to vector<2x4xf32>
    %cst_78 = arith.constant dense<0.000000e+00> : vector<2x256xf32>
    %204 = tpu.matmul %203, %201, %cst_78 {dimension_numbers = #tpu.dot_dimension_numbers<[1], [0], [0], [1], [0, 0, 1, 1], [], []>} : vector<2x4xf32>, vector<4x256xf32>, vector<2x256xf32> -> vector<2x256xf32>
    %205 = arith.addf %198, %204 : vector<2x256xf32>
    %c4 = arith.constant 4 : index
    %c0_79 = arith.constant 0 : index
    %c0_80 = arith.constant 0 : index
    %206 = vector.load %arg2[%c4, %c0_79, %c0_80] : memref<9x2x4xf32, #tpu.memory_space<vmem>>, vector<1x2x4xf32>
    %207 = vector.shape_cast %206 : vector<1x2x4xf32> to vector<2x4xf32>
    %cst_81 = arith.constant dense<0.000000e+00> : vector<2x256xf32>
    %208 = tpu.matmul %207, %175, %cst_81 {dimension_numbers = #tpu.dot_dimension_numbers<[1], [0], [0], [1], [0, 0, 1, 1], [], []>} : vector<2x4xf32>, vector<4x256xf32>, vector<2x256xf32> -> vector<2x256xf32>
    %209 = arith.addf %205, %208 : vector<2x256xf32>
    %c255_i32_82 = arith.constant 255 : i32
    %210 = tpu.dynamic_rotate %175 by %c255_i32_82 dim 1 : vector<4x256xf32>, i32 -> vector<4x256xf32>
    %211 = vector.broadcast %111 : vector<1x256xf32> to vector<4x256xf32>
    %212 = arith.mulf %210, %211 : vector<4x256xf32>
    %c5 = arith.constant 5 : index
    %c0_83 = arith.constant 0 : index
    %c0_84 = arith.constant 0 : index
    %213 = vector.load %arg2[%c5, %c0_83, %c0_84] : memref<9x2x4xf32, #tpu.memory_space<vmem>>, vector<1x2x4xf32>
    %214 = vector.shape_cast %213 : vector<1x2x4xf32> to vector<2x4xf32>
    %cst_85 = arith.constant dense<0.000000e+00> : vector<2x256xf32>
    %215 = tpu.matmul %214, %212, %cst_85 {dimension_numbers = #tpu.dot_dimension_numbers<[1], [0], [0], [1], [0, 0, 1, 1], [], []>} : vector<2x4xf32>, vector<4x256xf32>, vector<2x256xf32> -> vector<2x256xf32>
    %216 = arith.addf %209, %215 : vector<2x256xf32>
    %c241_i32 = arith.constant 241 : i32
    %217 = tpu.dynamic_rotate %175 by %c241_i32 dim 1 : vector<4x256xf32>, i32 -> vector<4x256xf32>
    %218 = vector.broadcast %132 : vector<1x256xf32> to vector<4x256xf32>
    %219 = arith.mulf %217, %218 : vector<4x256xf32>
    %c6 = arith.constant 6 : index
    %c0_86 = arith.constant 0 : index
    %c0_87 = arith.constant 0 : index
    %220 = vector.load %arg2[%c6, %c0_86, %c0_87] : memref<9x2x4xf32, #tpu.memory_space<vmem>>, vector<1x2x4xf32>
    %221 = vector.shape_cast %220 : vector<1x2x4xf32> to vector<2x4xf32>
    %cst_88 = arith.constant dense<0.000000e+00> : vector<2x256xf32>
    %222 = tpu.matmul %221, %219, %cst_88 {dimension_numbers = #tpu.dot_dimension_numbers<[1], [0], [0], [1], [0, 0, 1, 1], [], []>} : vector<2x4xf32>, vector<4x256xf32>, vector<2x256xf32> -> vector<2x256xf32>
    %223 = arith.addf %216, %222 : vector<2x256xf32>
    %c240_i32 = arith.constant 240 : i32
    %224 = tpu.dynamic_rotate %175 by %c240_i32 dim 1 : vector<4x256xf32>, i32 -> vector<4x256xf32>
    %225 = vector.broadcast %153 : vector<1x256xf32> to vector<4x256xf32>
    %226 = arith.mulf %224, %225 : vector<4x256xf32>
    %c7 = arith.constant 7 : index
    %c0_89 = arith.constant 0 : index
    %c0_90 = arith.constant 0 : index
    %227 = vector.load %arg2[%c7, %c0_89, %c0_90] : memref<9x2x4xf32, #tpu.memory_space<vmem>>, vector<1x2x4xf32>
    %228 = vector.shape_cast %227 : vector<1x2x4xf32> to vector<2x4xf32>
    %cst_91 = arith.constant dense<0.000000e+00> : vector<2x256xf32>
    %229 = tpu.matmul %228, %226, %cst_91 {dimension_numbers = #tpu.dot_dimension_numbers<[1], [0], [0], [1], [0, 0, 1, 1], [], []>} : vector<2x4xf32>, vector<4x256xf32>, vector<2x256xf32> -> vector<2x256xf32>
    %230 = arith.addf %223, %229 : vector<2x256xf32>
    %c239_i32 = arith.constant 239 : i32
    %231 = tpu.dynamic_rotate %175 by %c239_i32 dim 1 : vector<4x256xf32>, i32 -> vector<4x256xf32>
    %232 = vector.broadcast %174 : vector<1x256xf32> to vector<4x256xf32>
    %233 = arith.mulf %231, %232 : vector<4x256xf32>
    %c8 = arith.constant 8 : index
    %c0_92 = arith.constant 0 : index
    %c0_93 = arith.constant 0 : index
    %234 = vector.load %arg2[%c8, %c0_92, %c0_93] : memref<9x2x4xf32, #tpu.memory_space<vmem>>, vector<1x2x4xf32>
    %235 = vector.shape_cast %234 : vector<1x2x4xf32> to vector<2x4xf32>
    %cst_94 = arith.constant dense<0.000000e+00> : vector<2x256xf32>
    %236 = tpu.matmul %235, %233, %cst_94 {dimension_numbers = #tpu.dot_dimension_numbers<[1], [0], [0], [1], [0, 0, 1, 1], [], []>} : vector<2x4xf32>, vector<4x256xf32>, vector<2x256xf32> -> vector<2x256xf32>
    %237 = arith.addf %230, %236 : vector<2x256xf32>
    %238 = vector.broadcast %176 : vector<2x1xf32> to vector<2x256xf32>
    %239 = arith.addf %237, %238 : vector<2x256xf32>
    %cst_95 = arith.constant 0.000000e+00 : f32
    %240 = vector.broadcast %cst_95 : f32 to vector<2x256xf32>
    %241 = arith.maximumf %239, %240 : vector<2x256xf32>
    %c0_96 = arith.constant 0 : index
    %c0_97 = arith.constant 0 : index
    %242 = vector.load %arg5[%c0_96, %c0_97] : memref<2x1xf32, #tpu.memory_space<vmem>>, vector<2x1xf32>
    %cst_98 = arith.constant 0.000000e+00 : f32
    %243 = vector.broadcast %cst_98 : f32 to vector<2x256xf32>
    %c17_i32_99 = arith.constant 17 : i32
    %244 = tpu.dynamic_rotate %241 by %c17_i32_99 dim 1 : vector<2x256xf32>, i32 -> vector<2x256xf32>
    %245 = vector.broadcast %27 : vector<1x256xf32> to vector<2x256xf32>
    %246 = arith.mulf %244, %245 : vector<2x256xf32>
    %c0_100 = arith.constant 0 : index
    %c0_101 = arith.constant 0 : index
    %c0_102 = arith.constant 0 : index
    %247 = vector.load %arg4[%c0_100, %c0_101, %c0_102] : memref<9x2x2xf32, #tpu.memory_space<vmem>>, vector<1x2x2xf32>
    %248 = vector.shape_cast %247 : vector<1x2x2xf32> to vector<2x2xf32>
    %cst_103 = arith.constant dense<0.000000e+00> : vector<2x256xf32>
    %249 = tpu.matmul %248, %246, %cst_103 {dimension_numbers = #tpu.dot_dimension_numbers<[1], [0], [0], [1], [0, 0, 1, 1], [], []>} : vector<2x2xf32>, vector<2x256xf32>, vector<2x256xf32> -> vector<2x256xf32>
    %250 = arith.addf %243, %249 : vector<2x256xf32>
    %c16_i32_104 = arith.constant 16 : i32
    %251 = tpu.dynamic_rotate %241 by %c16_i32_104 dim 1 : vector<2x256xf32>, i32 -> vector<2x256xf32>
    %252 = vector.broadcast %48 : vector<1x256xf32> to vector<2x256xf32>
    %253 = arith.mulf %251, %252 : vector<2x256xf32>
    %c1_105 = arith.constant 1 : index
    %c0_106 = arith.constant 0 : index
    %c0_107 = arith.constant 0 : index
    %254 = vector.load %arg4[%c1_105, %c0_106, %c0_107] : memref<9x2x2xf32, #tpu.memory_space<vmem>>, vector<1x2x2xf32>
    %255 = vector.shape_cast %254 : vector<1x2x2xf32> to vector<2x2xf32>
    %cst_108 = arith.constant dense<0.000000e+00> : vector<2x256xf32>
    %256 = tpu.matmul %255, %253, %cst_108 {dimension_numbers = #tpu.dot_dimension_numbers<[1], [0], [0], [1], [0, 0, 1, 1], [], []>} : vector<2x2xf32>, vector<2x256xf32>, vector<2x256xf32> -> vector<2x256xf32>
    %257 = arith.addf %250, %256 : vector<2x256xf32>
    %c15_i32_109 = arith.constant 15 : i32
    %258 = tpu.dynamic_rotate %241 by %c15_i32_109 dim 1 : vector<2x256xf32>, i32 -> vector<2x256xf32>
    %259 = vector.broadcast %69 : vector<1x256xf32> to vector<2x256xf32>
    %260 = arith.mulf %258, %259 : vector<2x256xf32>
    %c2_110 = arith.constant 2 : index
    %c0_111 = arith.constant 0 : index
    %c0_112 = arith.constant 0 : index
    %261 = vector.load %arg4[%c2_110, %c0_111, %c0_112] : memref<9x2x2xf32, #tpu.memory_space<vmem>>, vector<1x2x2xf32>
    %262 = vector.shape_cast %261 : vector<1x2x2xf32> to vector<2x2xf32>
    %cst_113 = arith.constant dense<0.000000e+00> : vector<2x256xf32>
    %263 = tpu.matmul %262, %260, %cst_113 {dimension_numbers = #tpu.dot_dimension_numbers<[1], [0], [0], [1], [0, 0, 1, 1], [], []>} : vector<2x2xf32>, vector<2x256xf32>, vector<2x256xf32> -> vector<2x256xf32>
    %264 = arith.addf %257, %263 : vector<2x256xf32>
    %c1_i32_114 = arith.constant 1 : i32
    %265 = tpu.dynamic_rotate %241 by %c1_i32_114 dim 1 : vector<2x256xf32>, i32 -> vector<2x256xf32>
    %266 = vector.broadcast %90 : vector<1x256xf32> to vector<2x256xf32>
    %267 = arith.mulf %265, %266 : vector<2x256xf32>
    %c3_115 = arith.constant 3 : index
    %c0_116 = arith.constant 0 : index
    %c0_117 = arith.constant 0 : index
    %268 = vector.load %arg4[%c3_115, %c0_116, %c0_117] : memref<9x2x2xf32, #tpu.memory_space<vmem>>, vector<1x2x2xf32>
    %269 = vector.shape_cast %268 : vector<1x2x2xf32> to vector<2x2xf32>
    %cst_118 = arith.constant dense<0.000000e+00> : vector<2x256xf32>
    %270 = tpu.matmul %269, %267, %cst_118 {dimension_numbers = #tpu.dot_dimension_numbers<[1], [0], [0], [1], [0, 0, 1, 1], [], []>} : vector<2x2xf32>, vector<2x256xf32>, vector<2x256xf32> -> vector<2x256xf32>
    %271 = arith.addf %264, %270 : vector<2x256xf32>
    %c4_119 = arith.constant 4 : index
    %c0_120 = arith.constant 0 : index
    %c0_121 = arith.constant 0 : index
    %272 = vector.load %arg4[%c4_119, %c0_120, %c0_121] : memref<9x2x2xf32, #tpu.memory_space<vmem>>, vector<1x2x2xf32>
    %273 = vector.shape_cast %272 : vector<1x2x2xf32> to vector<2x2xf32>
    %cst_122 = arith.constant dense<0.000000e+00> : vector<2x256xf32>
    %274 = tpu.matmul %273, %241, %cst_122 {dimension_numbers = #tpu.dot_dimension_numbers<[1], [0], [0], [1], [0, 0, 1, 1], [], []>} : vector<2x2xf32>, vector<2x256xf32>, vector<2x256xf32> -> vector<2x256xf32>
    %275 = arith.addf %271, %274 : vector<2x256xf32>
    %c255_i32_123 = arith.constant 255 : i32
    %276 = tpu.dynamic_rotate %241 by %c255_i32_123 dim 1 : vector<2x256xf32>, i32 -> vector<2x256xf32>
    %277 = vector.broadcast %111 : vector<1x256xf32> to vector<2x256xf32>
    %278 = arith.mulf %276, %277 : vector<2x256xf32>
    %c5_124 = arith.constant 5 : index
    %c0_125 = arith.constant 0 : index
    %c0_126 = arith.constant 0 : index
    %279 = vector.load %arg4[%c5_124, %c0_125, %c0_126] : memref<9x2x2xf32, #tpu.memory_space<vmem>>, vector<1x2x2xf32>
    %280 = vector.shape_cast %279 : vector<1x2x2xf32> to vector<2x2xf32>
    %cst_127 = arith.constant dense<0.000000e+00> : vector<2x256xf32>
    %281 = tpu.matmul %280, %278, %cst_127 {dimension_numbers = #tpu.dot_dimension_numbers<[1], [0], [0], [1], [0, 0, 1, 1], [], []>} : vector<2x2xf32>, vector<2x256xf32>, vector<2x256xf32> -> vector<2x256xf32>
    %282 = arith.addf %275, %281 : vector<2x256xf32>
    %c241_i32_128 = arith.constant 241 : i32
    %283 = tpu.dynamic_rotate %241 by %c241_i32_128 dim 1 : vector<2x256xf32>, i32 -> vector<2x256xf32>
    %284 = vector.broadcast %132 : vector<1x256xf32> to vector<2x256xf32>
    %285 = arith.mulf %283, %284 : vector<2x256xf32>
    %c6_129 = arith.constant 6 : index
    %c0_130 = arith.constant 0 : index
    %c0_131 = arith.constant 0 : index
    %286 = vector.load %arg4[%c6_129, %c0_130, %c0_131] : memref<9x2x2xf32, #tpu.memory_space<vmem>>, vector<1x2x2xf32>
    %287 = vector.shape_cast %286 : vector<1x2x2xf32> to vector<2x2xf32>
    %cst_132 = arith.constant dense<0.000000e+00> : vector<2x256xf32>
    %288 = tpu.matmul %287, %285, %cst_132 {dimension_numbers = #tpu.dot_dimension_numbers<[1], [0], [0], [1], [0, 0, 1, 1], [], []>} : vector<2x2xf32>, vector<2x256xf32>, vector<2x256xf32> -> vector<2x256xf32>
    %289 = arith.addf %282, %288 : vector<2x256xf32>
    %c240_i32_133 = arith.constant 240 : i32
    %290 = tpu.dynamic_rotate %241 by %c240_i32_133 dim 1 : vector<2x256xf32>, i32 -> vector<2x256xf32>
    %291 = vector.broadcast %153 : vector<1x256xf32> to vector<2x256xf32>
    %292 = arith.mulf %290, %291 : vector<2x256xf32>
    %c7_134 = arith.constant 7 : index
    %c0_135 = arith.constant 0 : index
    %c0_136 = arith.constant 0 : index
    %293 = vector.load %arg4[%c7_134, %c0_135, %c0_136] : memref<9x2x2xf32, #tpu.memory_space<vmem>>, vector<1x2x2xf32>
    %294 = vector.shape_cast %293 : vector<1x2x2xf32> to vector<2x2xf32>
    %cst_137 = arith.constant dense<0.000000e+00> : vector<2x256xf32>
    %295 = tpu.matmul %294, %292, %cst_137 {dimension_numbers = #tpu.dot_dimension_numbers<[1], [0], [0], [1], [0, 0, 1, 1], [], []>} : vector<2x2xf32>, vector<2x256xf32>, vector<2x256xf32> -> vector<2x256xf32>
    %296 = arith.addf %289, %295 : vector<2x256xf32>
    %c239_i32_138 = arith.constant 239 : i32
    %297 = tpu.dynamic_rotate %241 by %c239_i32_138 dim 1 : vector<2x256xf32>, i32 -> vector<2x256xf32>
    %298 = vector.broadcast %174 : vector<1x256xf32> to vector<2x256xf32>
    %299 = arith.mulf %297, %298 : vector<2x256xf32>
    %c8_139 = arith.constant 8 : index
    %c0_140 = arith.constant 0 : index
    %c0_141 = arith.constant 0 : index
    %300 = vector.load %arg4[%c8_139, %c0_140, %c0_141] : memref<9x2x2xf32, #tpu.memory_space<vmem>>, vector<1x2x2xf32>
    %301 = vector.shape_cast %300 : vector<1x2x2xf32> to vector<2x2xf32>
    %cst_142 = arith.constant dense<0.000000e+00> : vector<2x256xf32>
    %302 = tpu.matmul %301, %299, %cst_142 {dimension_numbers = #tpu.dot_dimension_numbers<[1], [0], [0], [1], [0, 0, 1, 1], [], []>} : vector<2x2xf32>, vector<2x256xf32>, vector<2x256xf32> -> vector<2x256xf32>
    %303 = arith.addf %296, %302 : vector<2x256xf32>
    %304 = vector.broadcast %242 : vector<2x1xf32> to vector<2x256xf32>
    %305 = arith.addf %303, %304 : vector<2x256xf32>
    %cst_143 = arith.constant 0.000000e+00 : f32
    %306 = vector.broadcast %cst_143 : f32 to vector<2x256xf32>
    %307 = arith.maximumf %305, %306 : vector<2x256xf32>
    %c0_144 = arith.constant 0 : index
    %c0_145 = arith.constant 0 : index
    %308 = vector.load %arg6[%c0_144, %c0_145] : memref<4x2xf32, #tpu.memory_space<vmem>>, vector<4x2xf32>
    %cst_146 = arith.constant dense<0.000000e+00> : vector<4x256xf32>
    %309 = tpu.matmul %308, %307, %cst_146 {dimension_numbers = #tpu.dot_dimension_numbers<[1], [0], [0], [1], [0, 0, 1, 1], [], []>} : vector<4x2xf32>, vector<2x256xf32>, vector<4x256xf32> -> vector<4x256xf32>
    %c0_147 = arith.constant 0 : index
    %c0_148 = arith.constant 0 : index
    %310 = vector.load %arg7[%c0_147, %c0_148] : memref<4x1xf32, #tpu.memory_space<vmem>>, vector<4x1xf32>
    %311 = vector.broadcast %310 : vector<4x1xf32> to vector<4x256xf32>
    %312 = arith.addf %309, %311 : vector<4x256xf32>
    %313 = arith.negf %312 : vector<4x256xf32>
    %314 = math.exp %313 : vector<4x256xf32>
    %cst_149 = arith.constant 1.000000e+00 : f32
    %315 = vector.broadcast %cst_149 : f32 to vector<4x256xf32>
    %316 = arith.addf %315, %314 : vector<4x256xf32>
    %317 = arith.divf %315, %316 : vector<4x256xf32>
    %c0_150 = arith.constant 0 : index
    %c0_151 = arith.constant 0 : index
    %318 = vector.load %arg8[%c0_150, %c0_151] : memref<4x256xf32, #tpu.memory_space<vmem>>, vector<4x256xf32>
    tpu.vector_store %arg8[%c0_150, %c0_151], %317 {strides = array<i32>} : memref<4x256xf32, #tpu.memory_space<vmem>>, vector<4x256xf32>,
    return
  }
  func.func @transform_0(%arg0: i32) -> (i32, i32) {
    %c0_i32 = arith.constant 0 : i32
    %c0_i32_0 = arith.constant 0 : i32
    return %c0_i32, %arg0 : i32, i32
  }
  func.func @transform_1(%arg0: i32) -> (i32, i32, i32) {
    %c0_i32 = arith.constant 0 : i32
    %c0_i32_0 = arith.constant 0 : i32
    %c0_i32_1 = arith.constant 0 : i32
    %c0_i32_2 = arith.constant 0 : i32
    return %c0_i32, %c0_i32_0, %c0_i32_1 : i32, i32, i32
  }
  func.func @transform_2(%arg0: i32) -> (i32, i32) {
    %c0_i32 = arith.constant 0 : i32
    %c0_i32_0 = arith.constant 0 : i32
    %c0_i32_1 = arith.constant 0 : i32
    return %c0_i32, %c0_i32_0 : i32, i32
  }
  func.func @transform_3(%arg0: i32) -> (i32, i32, i32) {
    %c0_i32 = arith.constant 0 : i32
    %c0_i32_0 = arith.constant 0 : i32
    %c0_i32_1 = arith.constant 0 : i32
    %c0_i32_2 = arith.constant 0 : i32
    return %c0_i32, %c0_i32_0, %c0_i32_1 : i32, i32, i32
  }
  func.func @transform_4(%arg0: i32) -> (i32, i32) {
    %c0_i32 = arith.constant 0 : i32
    %c0_i32_0 = arith.constant 0 : i32
    %c0_i32_1 = arith.constant 0 : i32
    return %c0_i32, %c0_i32_0 : i32, i32
  }
  func.func @transform_5(%arg0: i32) -> (i32, i32) {
    %c0_i32 = arith.constant 0 : i32
    %c0_i32_0 = arith.constant 0 : i32
    %c0_i32_1 = arith.constant 0 : i32
    return %c0_i32, %c0_i32_0 : i32, i32
  }
  func.func @transform_6(%arg0: i32) -> (i32, i32) {
    %c0_i32 = arith.constant 0 : i32
    %c0_i32_0 = arith.constant 0 : i32
    %c0_i32_1 = arith.constant 0 : i32
    return %c0_i32, %c0_i32_0 : i32, i32
  }
  func.func @transform_7(%arg0: i32) -> (i32, i32) {
    %c0_i32 = arith.constant 0 : i32
    %c0_i32_0 = arith.constant 0 : i32
    return %c0_i32, %arg0 : i32, i32
  }
}

</mosaic_0001>

<llo_original>
// kernel: tpu_custom_call.1
$region0: #{tpu_custom_call.1}
  #allocation0 [shape = 'u32[]', space=smem, size = 0x4, offset = 0x4, fixed_abs, tag = 'smem constant byte address 0x4 - core index']
  #allocation1 [shape = 'u32[144,128]{1,0:T(1,128)}', space=vmem, size = 0x12000, scoped, tag = 'internal scratch']
  %s0 = inlined_call_operand.vmem [shape: f32[4,512], index: 0, kind: input, shape index: {}]
  %s1 = inlined_call_operand.vmem [shape: f32[9,2,4], index: 1, kind: input, shape index: {}]
  %s2 = inlined_call_operand.vmem [shape: f32[2,1], index: 2, kind: input, shape index: {}]
  %s3 = inlined_call_operand.vmem [shape: f32[9,2,2], index: 3, kind: input, shape index: {}]
  %s4 = inlined_call_operand.vmem [shape: f32[2,1], index: 4, kind: input, shape index: {}]
  %s5 = inlined_call_operand.vmem [shape: f32[4,2], index: 5, kind: input, shape index: {}]
  %s6 = inlined_call_operand.vmem [shape: f32[4,1], index: 6, kind: input, shape index: {}]
  %s7 = inlined_call_operand.hbm [shape: f32[4,512], index: 7, kind: output, shape index: {}]
  %s8 = sld [smem:[#allocation0]]
  $region61: #{tpu_custom_call.1} parent=0
    _
  %s10 = ssub.s32 1, %s8
  %s11 = scalar_select 0, %s10, %s8
  $region1: #{tpu_custom_call.1} parent=0
    #allocation2 [shape = 'u8[8192]{0}', space=vmem, size = 0x2000, scoped, tag = 'output window, operand 0']
    #allocation3 [shape = 's32[2]{0}', space=sflag, size = 0x8, scoped, tag = 'scoped memory for tpu_custom_call.1']
    %12 = vsyncpa [#allocation3], 0
    %s13 = scalar_lea.sflag [#allocation3], 1
    %14 = vsyncpa %s13, 0
    loop: start=0, step=1, limit=4
    $region2: #{tpu_custom_call.1} parent=1 // loop_pre_header
      _
    $region3: #{tpu_custom_call.1} parent=1 // loop_header
      %s16 = sphi 0, %s20
      %p17 = scmp.ge.s32.totalorder %s16, 4
      %s26 = sphi 0, %s28
      %s29 = sphi 0, %s26
      %s30 = sphi 0, %s29
      %s46 = sphi 0, %s30
      %s50 = sphi 0, %s50
      %s52 = sphi 0, %s50
      %s53 = sphi 0, %s52
      %s67 = sphi 0, %s53
      %s71 = sphi 0, %s71
      %s73 = sphi 0, %s71
      %s74 = sphi 0, %s73
      %s88 = sphi 0, %s74
      %s92 = sphi 0, %s92
      %s94 = sphi 0, %s92
      %s95 = sphi 0, %s94
      %s109 = sphi 0, %s95
      %s113 = sphi 0, %s113
      %s115 = sphi 0, %s113
      %s116 = sphi 0, %s115
      %s130 = sphi 0, %s116
      %s134 = sphi 0, %s134
      %s136 = sphi 0, %s134
      %s137 = sphi 0, %s136
      %s151 = sphi 0, %s137
      %s155 = sphi 0, %s155
      %s157 = sphi 0, %s155
      %s158 = sphi 0, %s157
      %s172 = sphi 0, %s158
      %s178 = sphi 0, %s180
      %s181 = sphi 0, %s178
      %s182 = sphi 0, %s181
      %s198 = sphi 0, %s182
    $region4: #{tpu_custom_call.1} parent=1 // loop_header_branch
      %19 = sbr.rel (%p17) target = $region8
    $region5: #{tpu_custom_call.1} parent=1 // loop_body
      %s21 = ssub.s32 %s16, 1
      %s22 = ssub.s32 %s16, 2
      %s23 = sadd.s32 %s16, 1
      %s24 = ssub.s32 %s16, %s23
      %p25 = scmp.eq.s32.totalorder %s24, 0
      %s27 = sadd.s32 %s26, 1
      %s28 = scalar_select %p25, %s26, %s27
      %p31 = pneg %p25
      %p32 = scmp.eq.s32.totalorder %s16, 1
      %p33 = por %p31, %p32
      %p34 = scmp.ne.s32.totalorder %s26, %s29
      %p35 = scmp.eq.s32.totalorder %s16, 0
      %p36 = por %p34, %p35
      %p37 = scmp.ne.s32.totalorder %s26, %s29
      %p38 = scmp.eq.s32.totalorder %s21, 1
      %p39 = por %p37, %p38
      %p40 = scmp.ne.s32.totalorder %s29, %s30
      %p41 = scmp.eq.s32.totalorder %s21, 0
      %p42 = por %p40, %p41
      %p43 = scmp.ne.s32.totalorder %s29, %s30
      %p44 = scmp.eq.s32.totalorder %s22, 1
      %p45 = por %p43, %p44
      %p47 = scmp.ne.s32.totalorder %s30, %s46
      %p48 = scmp.eq.s32.totalorder %s22, 0
      %p49 = por %p47, %p48
      %s51 = sadd.s32 %s50, 1
      %p54 = scmp.eq.s32.totalorder %s16, 1
      %p55 = scmp.ne.s32.totalorder %s50, %s52
      %p56 = scmp.eq.s32.totalorder %s16, 0
      %p57 = por %p55, %p56
      %p58 = scmp.ne.s32.totalorder %s50, %s52
      %p59 = scmp.eq.s32.totalorder %s21, 1
      %p60 = por %p58, %p59
      %p61 = scmp.ne.s32.totalorder %s52, %s53
      %p62 = scmp.eq.s32.totalorder %s21, 0
      %p63 = por %p61, %p62
      %p64 = scmp.ne.s32.totalorder %s52, %s53
      %p65 = scmp.eq.s32.totalorder %s22, 1
      %p66 = por %p64, %p65
      %p68 = scmp.ne.s32.totalorder %s53, %s67
      %p69 = scmp.eq.s32.totalorder %s22, 0
      %p70 = por %p68, %p69
      %s72 = sadd.s32 %s71, 1
      %p75 = scmp.eq.s32.totalorder %s16, 1
      %p76 = scmp.ne.s32.totalorder %s71, %s73
      %p77 = scmp.eq.s32.totalorder %s16, 0
      %p78 = por %p76, %p77
      %p79 = scmp.ne.s32.totalorder %s71, %s73
      %p80 = scmp.eq.s32.totalorder %s21, 1
      %p81 = por %p79, %p80
      %p82 = scmp.ne.s32.totalorder %s73, %s74
      %p83 = scmp.eq.s32.totalorder %s21, 0
      %p84 = por %p82, %p83
      %p85 = scmp.ne.s32.totalorder %s73, %s74
      %p86 = scmp.eq.s32.totalorder %s22, 1
      %p87 = por %p85, %p86
      %p89 = scmp.ne.s32.totalorder %s74, %s88
      %p90 = scmp.eq.s32.totalorder %s22, 0
      %p91 = por %p89, %p90
      %s93 = sadd.s32 %s92, 1
      %p96 = scmp.eq.s32.totalorder %s16, 1
      %p97 = scmp.ne.s32.totalorder %s92, %s94
      %p98 = scmp.eq.s32.totalorder %s16, 0
      %p99 = por %p97, %p98
      %p100 = scmp.ne.s32.totalorder %s92, %s94
      %p101 = scmp.eq.s32.totalorder %s21, 1
      %p102 = por %p100, %p101
      %p103 = scmp.ne.s32.totalorder %s94, %s95
      %p104 = scmp.eq.s32.totalorder %s21, 0
      %p105 = por %p103, %p104
      %p106 = scmp.ne.s32.totalorder %s94, %s95
      %p107 = scmp.eq.s32.totalorder %s22, 1
      %p108 = por %p106, %p107
      %p110 = scmp.ne.s32.totalorder %s95, %s109
      %p111 = scmp.eq.s32.totalorder %s22, 0
      %p112 = por %p110, %p111
      %s114 = sadd.s32 %s113, 1
      %p117 = scmp.eq.s32.totalorder %s16, 1
      %p118 = scmp.ne.s32.totalorder %s113, %s115
      %p119 = scmp.eq.s32.totalorder %s16, 0
      %p120 = por %p118, %p119
      %p121 = scmp.ne.s32.totalorder %s113, %s115
      %p122 = scmp.eq.s32.totalorder %s21, 1
      %p123 = por %p121, %p122
      %p124 = scmp.ne.s32.totalorder %s115, %s116
      %p125 = scmp.eq.s32.totalorder %s21, 0
      %p126 = por %p124, %p125
      %p127 = scmp.ne.s32.totalorder %s115, %s116
      %p128 = scmp.eq.s32.totalorder %s22, 1
      %p129 = por %p127, %p128
      %p131 = scmp.ne.s32.totalorder %s116, %s130
      %p132 = scmp.eq.s32.totalorder %s22, 0
      %p133 = por %p131, %p132
      %s135 = sadd.s32 %s134, 1
      %p138 = scmp.eq.s32.totalorder %s16, 1
      %p139 = scmp.ne.s32.totalorder %s134, %s136
      %p140 = scmp.eq.s32.totalorder %s16, 0
      %p141 = por %p139, %p140
      %p142 = scmp.ne.s32.totalorder %s134, %s136
      %p143 = scmp.eq.s32.totalorder %s21, 1
      %p144 = por %p142, %p143
      %p145 = scmp.ne.s32.totalorder %s136, %s137
      %p146 = scmp.eq.s32.totalorder %s21, 0
      %p147 = por %p145, %p146
      %p148 = scmp.ne.s32.totalorder %s136, %s137
      %p149 = scmp.eq.s32.totalorder %s22, 1
      %p150 = por %p148, %p149
      %p152 = scmp.ne.s32.totalorder %s137, %s151
      %p153 = scmp.eq.s32.totalorder %s22, 0
      %p154 = por %p152, %p153
      %s156 = sadd.s32 %s155, 1
      %p159 = scmp.eq.s32.totalorder %s16, 1
      %p160 = scmp.ne.s32.totalorder %s155, %s157
      %p161 = scmp.eq.s32.totalorder %s16, 0
      %p162 = por %p160, %p161
      %p163 = scmp.ne.s32.totalorder %s155, %s157
      %p164 = scmp.eq.s32.totalorder %s21, 1
      %p165 = por %p163, %p164
      %p166 = scmp.ne.s32.totalorder %s157, %s158
      %p167 = scmp.eq.s32.totalorder %s21, 0
      %p168 = por %p166, %p167
      %p169 = scmp.ne.s32.totalorder %s157, %s158
      %p170 = scmp.eq.s32.totalorder %s22, 1
      %p171 = por %p169, %p170
      %p173 = scmp.ne.s32.totalorder %s158, %s172
      %p174 = scmp.eq.s32.totalorder %s22, 0
      %p175 = por %p173, %p174
      %s176 = ssub.s32 %s16, %s23
      %p177 = scmp.eq.s32.totalorder %s176, 0
      %s179 = sadd.s32 %s178, 1
      %s180 = scalar_select %p177, %s178, %s179
      %p183 = pneg %p177
      %p184 = scmp.eq.s32.totalorder %s16, 1
      %p185 = por %p183, %p184
      %p186 = scmp.ne.s32.totalorder %s178, %s181
      %p187 = scmp.eq.s32.totalorder %s16, 0
      %p188 = por %p186, %p187
      %p189 = scmp.ne.s32.totalorder %s178, %s181
      %p190 = scmp.eq.s32.totalorder %s21, 1
      %p191 = por %p189, %p190
      %p192 = scmp.ne.s32.totalorder %s181, %s182
      %p193 = scmp.eq.s32.totalorder %s21, 0
      %p194 = por %p192, %p193
      %p195 = scmp.ne.s32.totalorder %s181, %s182
      %p196 = scmp.eq.s32.totalorder %s22, 1
      %p197 = por %p195, %p196
      %p199 = scmp.ne.s32.totalorder %s182, %s198
      %p200 = scmp.eq.s32.totalorder %s22, 0
      %p201 = por %p199, %p200
      %p202 = scmp.le.s32.totalorder 1, %s16
      %p203 = scmp.lt.s32.totalorder %s16, 3
      %p204 = pnand %p202, %p203
      %p205 = pneg %p204
      // Predicated region
      $region9: #{tpu_custom_call.1} parent=5 // pred_check
        _
      $region10: #{tpu_custom_call.1} parent=5 // pred_check_branch
        %207 = sbr.rel (%p204) target = $region12
      $region11: #{tpu_custom_call.1} parent=5 // pred_region
        %s208 = ssub.s32 %s16, 1
        // Predicated region
        $region13: #{tpu_custom_call.1} parent=11 // pred_check
          %p209 = pneg %p63
        $region14: #{tpu_custom_call.1} parent=11 // pred_check_branch
          %211 = sbr.rel (%p209) target = $region16
        $region15: #{tpu_custom_call.1} parent=11 // pred_region
          _
        $region16: #{tpu_custom_call.1} parent=11 // pred_fallthru
          _
        // Predicated region
        $region17: #{tpu_custom_call.1} parent=11 // pred_check
          %p212 = pneg %p84
        $region18: #{tpu_custom_call.1} parent=11 // pred_check_branch
          %214 = sbr.rel (%p212) target = $region20
        $region19: #{tpu_custom_call.1} parent=11 // pred_region
          _
        $region20: #{tpu_custom_call.1} parent=11 // pred_fallthru
          _
        // Predicated region
        $region21: #{tpu_custom_call.1} parent=11 // pred_check
          %p215 = pneg %p105
        $region22: #{tpu_custom_call.1} parent=11 // pred_check_branch
          %217 = sbr.rel (%p215) target = $region24
        $region23: #{tpu_custom_call.1} parent=11 // pred_region
          _
        $region24: #{tpu_custom_call.1} parent=11 // pred_fallthru
          _
        // Predicated region
        $region25: #{tpu_custom_call.1} parent=11 // pred_check
          %p218 = pneg %p126
        $region26: #{tpu_custom_call.1} parent=11 // pred_check_branch
          %220 = sbr.rel (%p218) target = $region28
        $region27: #{tpu_custom_call.1} parent=11 // pred_region
          _
        $region28: #{tpu_custom_call.1} parent=11 // pred_fallthru
          _
        // Predicated region
        $region29: #{tpu_custom_call.1} parent=11 // pred_check
          %p221 = pneg %p147
        $region30: #{tpu_custom_call.1} parent=11 // pred_check_branch
          %223 = sbr.rel (%p221) target = $region32
        $region31: #{tpu_custom_call.1} parent=11 // pred_region
          _
        $region32: #{tpu_custom_call.1} parent=11 // pred_fallthru
          _
        // Predicated region
        $region33: #{tpu_custom_call.1} parent=11 // pred_check
          %p224 = pneg %p168
        $region34: #{tpu_custom_call.1} parent=11 // pred_check_branch
          %226 = sbr.rel (%p224) target = $region36
        $region35: #{tpu_custom_call.1} parent=11 // pred_region
          _
        $region36: #{tpu_custom_call.1} parent=11 // pred_fallthru
          _
      $region12: #{tpu_custom_call.1} parent=5 // pred_fallthru
        _
      %p227 = scmp.lt.s32.totalorder %s16, 2
      // Predicated region
      $region37: #{tpu_custom_call.1} parent=5 // pred_check
        %p228 = pneg %p227
      $region38: #{tpu_custom_call.1} parent=5 // pred_check_branch
        %230 = sbr.rel (%p228) target = $region40
      $region39: #{tpu_custom_call.1} parent=5 // pred_region
        // Predicated region
        $region41: #{tpu_custom_call.1} parent=39 // pred_check
          %p231 = pneg %p36
        $region42: #{tpu_custom_call.1} parent=39 // pred_check_branch
          %233 = sbr.rel (%p231) target = $region44
        $region43: #{tpu_custom_call.1} parent=39 // pred_region
          %s234 = smul.u32 2, %s16
          %p235 = scmp.lt.s32.totalorder %s234, 3
          %s236 = scalar_select %p235, %s234, 3
          %s237 = smul.addr %s236, 4
          %s238 = scalar_lea.vmem %s0, %s237
          %s239 = smul.u32 2, %s16
        $region44: #{tpu_custom_call.1} parent=39 // pred_fallthru
          _
      $region40: #{tpu_custom_call.1} parent=5 // pred_fallthru
        _
      %p240 = scmp.le.s32.totalorder 1, %s16
      %p241 = scmp.lt.s32.totalorder %s16, 3
      %p242 = pnand %p240, %p241
      %p243 = pneg %p242
      // Predicated region
      $region45: #{tpu_custom_call.1} parent=5 // pred_check
        _
      $region46: #{tpu_custom_call.1} parent=5 // pred_check_branch
        %245 = sbr.rel (%p242) target = $region48
      $region47: #{tpu_custom_call.1} parent=5 // pred_region
        %s246 = ssub.s32 %s16, 1
        %s247 = smul.u32 2, %s21
        %p248 = scmp.lt.s32.totalorder %s247, 3
        %s249 = scalar_select %p248, %s247, 3
        %s250 = smul.addr %s249, 4
        %s251 = scalar_lea.vmem %s0, %s250
        %p252 = pneg %p42
        %p253 = pneg %p39
        %p254 = pneg %p63
        %p255 = pneg %p60
        %p256 = pneg %p84
        %p257 = pneg %p81
        %p258 = pneg %p105
        %p259 = pneg %p102
        %p260 = pneg %p126
        %p261 = pneg %p123
        %p262 = pneg %p147
        %p263 = pneg %p144
        %p264 = pneg %p168
        %p265 = pneg %p165
        %p266 = pneg %p194
        %p267 = pneg %p191
        %s268 = sand.u32 %s181, 1
        %s269 = scalar_lea.sflag [#allocation3], %s268
        %s270 = sand.u32 %s181, 1
        %s271 = smul.addr %s270, 8
        %s272 = scalar_lea.vmem [#allocation2], %s271
        %s273 = smul.u32 2, %s21
        %p274 = scmp.lt.s32.totalorder %s273, 3
        %s275 = scalar_select %p274, %s273, 3
        %s276 = smul.addr %s275, 4
        %s277 = scalar_lea.vmem %s0, %s276
        %s278 = smul.u32 2, %s21
        %s279 = smul.u32 2, %s21
        %v280 = vlaneseq
        %v281 = vand.u32 %v280, 127
        %v282 = vadd.s32 %v281, 128
        %v283 = vand.u32 %v281, 255
        %v284 = vand.u32 %v282, 255
        %v285 = vshra.s32 %v283, 4
        %v286 = vshra.s32 %v284, 4
        %v287 = vand.u32 %v283, 15
        %v288 = vand.u32 %v284, 15
        %v289 = vadd.s32 %v285, 4294967295
        %v290 = vadd.s32 %v286, 4294967295
        %vm291 = vcmp.ge.s32.totalorder %v289, 0
        %vm292 = vcmp.ge.s32.totalorder %v290, 0
        %vm293 = vcmp.lt.s32.totalorder %v289, 16
        %vm294 = vcmp.lt.s32.totalorder %v290, 16
        %vm295 = vmand %vm291, %vm293
        %vm296 = vmand %vm292, %vm294
        %v297 = vadd.s32 %v287, 4294967295
        %v298 = vadd.s32 %v288, 4294967295
        %vm299 = vcmp.ge.s32.totalorder %v297, 0
        %vm300 = vcmp.ge.s32.totalorder %v298, 0
        %vm301 = vmand %vm295, %vm299
        %vm302 = vmand %vm296, %vm300
        %vm303 = vcmp.lt.s32.totalorder %v297, 16
        %vm304 = vcmp.lt.s32.totalorder %v298, 16
        %vm305 = vmand %vm301, %vm303
        %vm306 = vmand %vm302, %vm304
        %v307 = vsel %vm305, 1, 0
        %v308 = vsel %vm306, 1, 0
        %v309 = vcvt.s32.f32 %v307
        %v310 = vcvt.s32.f32 %v308
        %vm311 = vcmp.ge.s32.totalorder %v287, 0
        %vm312 = vcmp.ge.s32.totalorder %v288, 0
        %vm313 = vmand %vm295, %vm311
        %vm314 = vmand %vm296, %vm312
        %vm315 = vcmp.lt.s32.totalorder %v287, 16
        %vm316 = vcmp.lt.s32.totalorder %v288, 16
        %vm317 = vmand %vm313, %vm315
        %vm318 = vmand %vm314, %vm316
        %v319 = vsel %vm317, 1, 0
        %v320 = vsel %vm318, 1, 0
        %v321 = vcvt.s32.f32 %v319
        %v322 = vcvt.s32.f32 %v320
        %v323 = vadd.s32 %v287, 1
        %v324 = vadd.s32 %v288, 1
        %vm325 = vcmp.ge.s32.totalorder %v323, 0
        %vm326 = vcmp.ge.s32.totalorder %v324, 0
        %vm327 = vmand %vm295, %vm325
        %vm328 = vmand %vm296, %vm326
        %vm329 = vcmp.lt.s32.totalorder %v323, 16
        %vm330 = vcmp.lt.s32.totalorder %v324, 16
        %vm331 = vmand %vm327, %vm329
        %vm332 = vmand %vm328, %vm330
        %v333 = vsel %vm331, 1, 0
        %v334 = vsel %vm332, 1, 0
        %v335 = vcvt.s32.f32 %v333
        %v336 = vcvt.s32.f32 %v334
        %vm337 = vcmp.ge.s32.totalorder %v285, 0
        %vm338 = vcmp.ge.s32.totalorder %v286, 0
        %vm339 = vcmp.lt.s32.totalorder %v285, 16
        %vm340 = vcmp.lt.s32.totalorder %v286, 16
        %vm341 = vmand %vm337, %vm339
        %vm342 = vmand %vm338, %vm340
        %vm343 = vmand %vm341, %vm299
        %vm344 = vmand %vm342, %vm300
        %vm345 = vmand %vm343, %vm303
        %vm346 = vmand %vm344, %vm304
        %v347 = vsel %vm345, 1, 0
        %v348 = vsel %vm346, 1, 0
        %v349 = vcvt.s32.f32 %v347
        %v350 = vcvt.s32.f32 %v348
        %vm351 = vmand %vm341, %vm325
        %vm352 = vmand %vm342, %vm326
        %vm353 = vmand %vm351, %vm329
        %vm354 = vmand %vm352, %vm330
        %v355 = vsel %vm353, 1, 0
        %v356 = vsel %vm354, 1, 0
        %v357 = vcvt.s32.f32 %v355
        %v358 = vcvt.s32.f32 %v356
        %v359 = vadd.s32 %v285, 1
        %v360 = vadd.s32 %v286, 1
        %vm361 = vcmp.ge.s32.totalorder %v359, 0
        %vm362 = vcmp.ge.s32.totalorder %v360, 0
        %vm363 = vcmp.lt.s32.totalorder %v359, 16
        %vm364 = vcmp.lt.s32.totalorder %v360, 16
        %vm365 = vmand %vm361, %vm363
        %vm366 = vmand %vm362, %vm364
        %vm367 = vmand %vm365, %vm299
        %vm368 = vmand %vm366, %vm300
        %vm369 = vmand %vm367, %vm303
        %vm370 = vmand %vm368, %vm304
        %v371 = vsel %vm369, 1, 0
        %v372 = vsel %vm370, 1, 0
        %v373 = vcvt.s32.f32 %v371
        %v374 = vcvt.s32.f32 %v372
        %vm375 = vmand %vm365, %vm311
        %vm376 = vmand %vm366, %vm312
        %vm377 = vmand %vm375, %vm315
        %vm378 = vmand %vm376, %vm316
        %v379 = vsel %vm377, 1, 0
        %v380 = vsel %vm378, 1, 0
        %v381 = vcvt.s32.f32 %v379
        %v382 = vcvt.s32.f32 %v380
        %vm383 = vmand %vm365, %vm325
        %vm384 = vmand %vm366, %vm326
        %vm385 = vmand %vm383, %vm329
        %vm386 = vmand %vm384, %vm330
        %v387 = vsel %vm385, 1, 0
        %v388 = vsel %vm386, 1, 0
        %v389 = vcvt.s32.f32 %v387
        %v390 = vcvt.s32.f32 %v388
        %v391 = vld [vmem:[%s277] sm:$0xff]
        %v392 = vld [vmem:[%s2] sm:$0x3]
        %v394 = vcombine.high %v391, %v391
        %396 = vrot.lane.b32.xlu0 %v391, 17
        %v397 = vpop.permute.xlu0 %396
        %398 = vrot.lane.b32.xlu0 %v394, 17
        %v399 = vpop.permute.xlu0 %398
        %vm400 = vcmp.lt.s32.totalorder %v281, 17
        %v401 = vsel %vm400, %v397, %v399
        %v402 = vsel %vm400, %v399, %v397
        %v403 = vmul.f32 %v402, %v309
        %v404 = vmul.f32 %v401, %v310
        %v405 = vld [vmem:[%s1] sm:$0x3]
        %406 = vrot.lane.b32.xlu0 %v391, 16
        %v407 = vpop.permute.xlu0 %406
        %408 = vrot.lane.b32.xlu0 %v394, 16
        %v409 = vpop.permute.xlu0 %408
        %vm410 = vcmp.lt.s32.totalorder %v281, 16
        %v411 = vsel %vm410, %v407, %v409
        %v412 = vsel %vm410, %v409, %v407
        %v413 = vmul.f32 %v412, %v321
        %v414 = vmul.f32 %v411, %v322
        %s415 = scalar_lea.vmem %s1, 2
        %v416 = vld [vmem:[%s415] sm:$0x3]
        %vm417 = vcmask 31744
        %v419 = vsel %vm417, %v416, 0
        %vm421 = vcmask 1043456
        %v423 = vsel %vm421, %v413, 0
        %v426 = vsel %vm421, %v414, 0
        %428 = vmatprep.subr.mxu0 0.0
        %429 = vmatpush1.msra.mxu0 0.0
        %430 = vmatprep.subr.mxu0 0.0
        %431 = vmatpush1.msra.mxu0 0.0
        %432 = vmatprep.subr.mxu0 0.0
        %433 = vmatpush1.msra.mxu0 0.0
        %434 = vmatprep.subr.mxu0 0.0
        %435 = vmatpush1.msra.mxu0 0.0
        %436 = vmatprep.subr.mxu0 0.0
        %437 = vmatpush1.msra.mxu0 0.0
        %438 = vmatprep.subr.mxu0 0.0
        %439 = vmatpush1.msra.mxu0 0.0
        %440 = vmatprep.subr.mxu0 0.0
        %441 = vmatpush1.msra.mxu0 0.0
        %442 = vmatprep.subr.mxu0 0.0
        %443 = vmatpush1.msra.mxu0 0.0
        %444 = vmatprep.subr.mxu0 0.0
        %445 = vmatpush1.msra.mxu0 0.0
        %446 = vmatprep.subr.mxu0 0.0
        %447 = vmatpush1.msra.mxu0 0.0
        %448 = vmatprep.subr.mxu0 0.0
        %449 = vmatpush1.msra.mxu0 0.0
        %450 = vmatprep.subr.mxu0 0.0
        %451 = vmatpush1.msra.mxu0 0.0
        %452 = vmatprep.subr.mxu0 0.0
        %453 = vmatpush1.msra.mxu0 0.0
        %454 = vmatprep.subr.mxu0 0.0
        %455 = vmatpush1.msra.mxu0 0.0
        %456 = vmatprep.subr.mxu0 0.0
        %457 = vmatpush1.msra.mxu0 0.0
        %458 = vmatprep.subr.mxu0 %v426
        %459 = vmatpush1.msra.mxu0 %v423
        %460 = vmatprep.subr.mxu0 0.0
        %461 = vmatpush2.msra.mxu0 0.0
        %462 = vmatprep.subr.mxu0 0.0
        %463 = vmatpush2.msra.mxu0 0.0
        %464 = vmatprep.subr.mxu0 0.0
        %465 = vmatpush2.msra.mxu0 0.0
        %466 = vmatprep.subr.mxu0 0.0
        %467 = vmatpush2.msra.mxu0 0.0
        %468 = vmatprep.subr.mxu0 0.0
        %469 = vmatpush2.msra.mxu0 0.0
        %470 = vmatprep.subr.mxu0 0.0
        %471 = vmatpush2.msra.mxu0 0.0
        %472 = vmatprep.subr.mxu0 0.0
        %473 = vmatpush2.msra.mxu0 0.0
        %474 = vmatprep.subr.mxu0 0.0
        %475 = vmatpush2.msra.mxu0 0.0
        %476 = vmatprep.subr.mxu0 0.0
        %477 = vmatpush2.msra.mxu0 0.0
        %478 = vmatprep.subr.mxu0 0.0
        %479 = vmatpush2.msra.mxu0 0.0
        %480 = vmatprep.subr.mxu0 0.0
        %481 = vmatpush2.msra.mxu0 0.0
        %482 = vmatprep.subr.mxu0 0.0
        %483 = vmatpush2.msra.mxu0 0.0
        %484 = vmatprep.subr.mxu0 0.0
        %485 = vmatpush2.msra.mxu0 0.0
        %486 = vmatprep.subr.mxu0 0.0
        %487 = vmatpush2.msra.mxu0 0.0
        %488 = vmatprep.subr.mxu0 0.0
        %489 = vmatpush2.msra.mxu0 0.0
        %490 = vmatprep.subr.mxu0 0.0
        %491 = vmatpush2.msra.mxu0 0.0
        %492 = vmatprep.mubr.f32.mxu0 0.0
        %493 = vmatmul.mubr.f32.gmra.mxu0 %v419
        %v494 = vpop.f32.mrf.mxu0
        %v495 = vadd.f32 0.0, %v494
        %v496 = vpop.f32.mrf.mxu0
        %v497 = vadd.f32 0.0, %v496
        %498 = vdwg.mxu0
        %v500 = vsel %vm417, %v405, 0
        %v503 = vsel %vm421, %v403, 0
        %v506 = vsel %vm421, %v404, 0
        %508 = vmatprep.subr.mxu0 0.0
        %509 = vmatpush1.msra.mxu0 0.0
        %510 = vmatprep.subr.mxu0 0.0
        %511 = vmatpush1.msra.mxu0 0.0
        %512 = vmatprep.subr.mxu0 0.0
        %513 = vmatpush1.msra.mxu0 0.0
        %514 = vmatprep.subr.mxu0 0.0
        %515 = vmatpush1.msra.mxu0 0.0
        %516 = vmatprep.subr.mxu0 0.0
        %517 = vmatpush1.msra.mxu0 0.0
        %518 = vmatprep.subr.mxu0 0.0
        %519 = vmatpush1.msra.mxu0 0.0
        %520 = vmatprep.subr.mxu0 0.0
        %521 = vmatpush1.msra.mxu0 0.0
        %522 = vmatprep.subr.mxu0 0.0
        %523 = vmatpush1.msra.mxu0 0.0
        %524 = vmatprep.subr.mxu0 0.0
        %525 = vmatpush1.msra.mxu0 0.0
        %526 = vmatprep.subr.mxu0 0.0
        %527 = vmatpush1.msra.mxu0 0.0
        %528 = vmatprep.subr.mxu0 0.0
        %529 = vmatpush1.msra.mxu0 0.0
        %530 = vmatprep.subr.mxu0 0.0
        %531 = vmatpush1.msra.mxu0 0.0
        %532 = vmatprep.subr.mxu0 0.0
        %533 = vmatpush1.msra.mxu0 0.0
        %534 = vmatprep.subr.mxu0 0.0
        %535 = vmatpush1.msra.mxu0 0.0
        %536 = vmatprep.subr.mxu0 0.0
        %537 = vmatpush1.msra.mxu0 0.0
        %538 = vmatprep.subr.mxu0 %v506
        %539 = vmatpush1.msra.mxu0 %v503
        %540 = vmatprep.subr.mxu0 0.0
        %541 = vmatpush2.msra.mxu0 0.0
        %542 = vmatprep.subr.mxu0 0.0
        %543 = vmatpush2.msra.mxu0 0.0
        %544 = vmatprep.subr.mxu0 0.0
        %545 = vmatpush2.msra.mxu0 0.0
        %546 = vmatprep.subr.mxu0 0.0
        %547 = vmatpush2.msra.mxu0 0.0
        %548 = vmatprep.subr.mxu0 0.0
        %549 = vmatpush2.msra.mxu0 0.0
        %550 = vmatprep.subr.mxu0 0.0
        %551 = vmatpush2.msra.mxu0 0.0
        %552 = vmatprep.subr.mxu0 0.0
        %553 = vmatpush2.msra.mxu0 0.0
        %554 = vmatprep.subr.mxu0 0.0
        %555 = vmatpush2.msra.mxu0 0.0
        %556 = vmatprep.subr.mxu0 0.0
        %557 = vmatpush2.msra.mxu0 0.0
        %558 = vmatprep.subr.mxu0 0.0
        %559 = vmatpush2.msra.mxu0 0.0
        %560 = vmatprep.subr.mxu0 0.0
        %561 = vmatpush2.msra.mxu0 0.0
        %562 = vmatprep.subr.mxu0 0.0
        %563 = vmatpush2.msra.mxu0 0.0
        %564 = vmatprep.subr.mxu0 0.0
        %565 = vmatpush2.msra.mxu0 0.0
        %566 = vmatprep.subr.mxu0 0.0
        %567 = vmatpush2.msra.mxu0 0.0
        %568 = vmatprep.subr.mxu0 0.0
        %569 = vmatpush2.msra.mxu0 0.0
        %570 = vmatprep.subr.mxu0 0.0
        %571 = vmatpush2.msra.mxu0 0.0
        %572 = vmatprep.mubr.f32.mxu0 0.0
        %573 = vmatmul.mubr.f32.gmra.mxu0 %v500
        %v574 = vpop.f32.mrf.mxu0
        %v575 = vadd.f32 %v495, %v574
        %v576 = vpop.f32.mrf.mxu0
        %v577 = vadd.f32 %v497, %v576
        %578 = vdwg.mxu0
        %579 = vrot.lane.b32.xlu0 %v391, 15
        %v580 = vpop.permute.xlu0 %579
        %581 = vrot.lane.b32.xlu0 %v394, 15
        %v582 = vpop.permute.xlu0 %581
        %vm583 = vcmp.lt.s32.totalorder %v281, 15
        %v584 = vsel %vm583, %v580, %v582
        %v585 = vsel %vm583, %v582, %v580
        %v586 = vmul.f32 %v585, %v335
        %v587 = vmul.f32 %v584, %v336
        %s588 = scalar_lea.vmem %s1, 4
        %v589 = vld [vmem:[%s588] sm:$0x3]
        %v591 = vsel %vm417, %v589, 0
        %v594 = vsel %vm421, %v586, 0
        %v597 = vsel %vm421, %v587, 0
        %599 = vmatprep.subr.mxu0 0.0
        %600 = vmatpush1.msra.mxu0 0.0
        %601 = vmatprep.subr.mxu0 0.0
        %602 = vmatpush1.msra.mxu0 0.0
        %603 = vmatprep.subr.mxu0 0.0
        %604 = vmatpush1.msra.mxu0 0.0
        %605 = vmatprep.subr.mxu0 0.0
        %606 = vmatpush1.msra.mxu0 0.0
        %607 = vmatprep.subr.mxu0 0.0
        %608 = vmatpush1.msra.mxu0 0.0
        %609 = vmatprep.subr.mxu0 0.0
        %610 = vmatpush1.msra.mxu0 0.0
        %611 = vmatprep.subr.mxu0 0.0
        %612 = vmatpush1.msra.mxu0 0.0
        %613 = vmatprep.subr.mxu0 0.0
        %614 = vmatpush1.msra.mxu0 0.0
        %615 = vmatprep.subr.mxu0 0.0
        %616 = vmatpush1.msra.mxu0 0.0
        %617 = vmatprep.subr.mxu0 0.0
        %618 = vmatpush1.msra.mxu0 0.0
        %619 = vmatprep.subr.mxu0 0.0
        %620 = vmatpush1.msra.mxu0 0.0
        %621 = vmatprep.subr.mxu0 0.0
        %622 = vmatpush1.msra.mxu0 0.0
        %623 = vmatprep.subr.mxu0 0.0
        %624 = vmatpush1.msra.mxu0 0.0
        %625 = vmatprep.subr.mxu0 0.0
        %626 = vmatpush1.msra.mxu0 0.0
        %627 = vmatprep.subr.mxu0 0.0
        %628 = vmatpush1.msra.mxu0 0.0
        %629 = vmatprep.subr.mxu0 %v597
        %630 = vmatpush1.msra.mxu0 %v594
        %631 = vmatprep.subr.mxu0 0.0
        %632 = vmatpush2.msra.mxu0 0.0
        %633 = vmatprep.subr.mxu0 0.0
        %634 = vmatpush2.msra.mxu0 0.0
        %635 = vmatprep.subr.mxu0 0.0
        %636 = vmatpush2.msra.mxu0 0.0
        %637 = vmatprep.subr.mxu0 0.0
        %638 = vmatpush2.msra.mxu0 0.0
        %639 = vmatprep.subr.mxu0 0.0
        %640 = vmatpush2.msra.mxu0 0.0
        %641 = vmatprep.subr.mxu0 0.0
        %642 = vmatpush2.msra.mxu0 0.0
        %643 = vmatprep.subr.mxu0 0.0
        %644 = vmatpush2.msra.mxu0 0.0
        %645 = vmatprep.subr.mxu0 0.0
        %646 = vmatpush2.msra.mxu0 0.0
        %647 = vmatprep.subr.mxu0 0.0
        %648 = vmatpush2.msra.mxu0 0.0
        %649 = vmatprep.subr.mxu0 0.0
        %650 = vmatpush2.msra.mxu0 0.0
        %651 = vmatprep.subr.mxu0 0.0
        %652 = vmatpush2.msra.mxu0 0.0
        %653 = vmatprep.subr.mxu0 0.0
        %654 = vmatpush2.msra.mxu0 0.0
        %655 = vmatprep.subr.mxu0 0.0
        %656 = vmatpush2.msra.mxu0 0.0
        %657 = vmatprep.subr.mxu0 0.0
        %658 = vmatpush2.msra.mxu0 0.0
        %659 = vmatprep.subr.mxu0 0.0
        %660 = vmatpush2.msra.mxu0 0.0
        %661 = vmatprep.subr.mxu0 0.0
        %662 = vmatpush2.msra.mxu0 0.0
        %663 = vmatprep.mubr.f32.mxu0 0.0
        %664 = vmatmul.mubr.f32.gmra.mxu0 %v591
        %v665 = vpop.f32.mrf.mxu0
        %v666 = vadd.f32 0.0, %v665
        %v667 = vpop.f32.mrf.mxu0
        %v668 = vadd.f32 0.0, %v667
        %669 = vdwg.mxu0
        %v670 = vadd.f32 %v575, %v666
        %v671 = vadd.f32 %v577, %v668
        %672 = vrot.lane.b32.xlu0 %v391, 1
        %v673 = vpop.permute.xlu0 %672
        %674 = vrot.lane.b32.xlu0 %v394, 1
        %v675 = vpop.permute.xlu0 %674
        %vm676 = vcmp.lt.s32.totalorder %v281, 1
        %v677 = vsel %vm676, %v673, %v675
        %v678 = vsel %vm676, %v675, %v673
        %v679 = vmul.f32 %v678, %v349
        %v680 = vmul.f32 %v677, %v350
        %s681 = scalar_lea.vmem %s1, 6
        %v682 = vld [vmem:[%s681] sm:$0x3]
        %v684 = vsel %vm417, %v682, 0
        %v687 = vsel %vm421, %v679, 0
        %v690 = vsel %vm421, %v680, 0
        %692 = vmatprep.subr.mxu0 0.0
        %693 = vmatpush1.msra.mxu0 0.0
        %694 = vmatprep.subr.mxu0 0.0
        %695 = vmatpush1.msra.mxu0 0.0
        %696 = vmatprep.subr.mxu0 0.0
        %697 = vmatpush1.msra.mxu0 0.0
        %698 = vmatprep.subr.mxu0 0.0
        %699 = vmatpush1.msra.mxu0 0.0
        %700 = vmatprep.subr.mxu0 0.0
        %701 = vmatpush1.msra.mxu0 0.0
        %702 = vmatprep.subr.mxu0 0.0
        %703 = vmatpush1.msra.mxu0 0.0
        %704 = vmatprep.subr.mxu0 0.0
        %705 = vmatpush1.msra.mxu0 0.0
        %706 = vmatprep.subr.mxu0 0.0
        %707 = vmatpush1.msra.mxu0 0.0
        %708 = vmatprep.subr.mxu0 0.0
        %709 = vmatpush1.msra.mxu0 0.0
        %710 = vmatprep.subr.mxu0 0.0
        %711 = vmatpush1.msra.mxu0 0.0
        %712 = vmatprep.subr.mxu0 0.0
        %713 = vmatpush1.msra.mxu0 0.0
        %714 = vmatprep.subr.mxu0 0.0
        %715 = vmatpush1.msra.mxu0 0.0
        %716 = vmatprep.subr.mxu0 0.0
        %717 = vmatpush1.msra.mxu0 0.0
        %718 = vmatprep.subr.mxu0 0.0
        %719 = vmatpush1.msra.mxu0 0.0
        %720 = vmatprep.subr.mxu0 0.0
        %721 = vmatpush1.msra.mxu0 0.0
        %722 = vmatprep.subr.mxu0 %v690
        %723 = vmatpush1.msra.mxu0 %v687
        %724 = vmatprep.subr.mxu0 0.0
        %725 = vmatpush2.msra.mxu0 0.0
        %726 = vmatprep.subr.mxu0 0.0
        %727 = vmatpush2.msra.mxu0 0.0
        %728 = vmatprep.subr.mxu0 0.0
        %729 = vmatpush2.msra.mxu0 0.0
        %730 = vmatprep.subr.mxu0 0.0
        %731 = vmatpush2.msra.mxu0 0.0
        %732 = vmatprep.subr.mxu0 0.0
        %733 = vmatpush2.msra.mxu0 0.0
        %734 = vmatprep.subr.mxu0 0.0
        %735 = vmatpush2.msra.mxu0 0.0
        %736 = vmatprep.subr.mxu0 0.0
        %737 = vmatpush2.msra.mxu0 0.0
        %738 = vmatprep.subr.mxu0 0.0
        %739 = vmatpush2.msra.mxu0 0.0
        %740 = vmatprep.subr.mxu0 0.0
        %741 = vmatpush2.msra.mxu0 0.0
        %742 = vmatprep.subr.mxu0 0.0
        %743 = vmatpush2.msra.mxu0 0.0
        %744 = vmatprep.subr.mxu0 0.0
        %745 = vmatpush2.msra.mxu0 0.0
        %746 = vmatprep.subr.mxu0 0.0
        %747 = vmatpush2.msra.mxu0 0.0
        %748 = vmatprep.subr.mxu0 0.0
        %749 = vmatpush2.msra.mxu0 0.0
        %750 = vmatprep.subr.mxu0 0.0
        %751 = vmatpush2.msra.mxu0 0.0
        %752 = vmatprep.subr.mxu0 0.0
        %753 = vmatpush2.msra.mxu0 0.0
        %754 = vmatprep.subr.mxu0 0.0
        %755 = vmatpush2.msra.mxu0 0.0
        %756 = vmatprep.mubr.f32.mxu0 0.0
        %757 = vmatmul.mubr.f32.gmra.mxu0 %v684
        %v758 = vpop.f32.mrf.mxu0
        %v759 = vadd.f32 0.0, %v758
        %v760 = vpop.f32.mrf.mxu0
        %v761 = vadd.f32 0.0, %v760
        %762 = vdwg.mxu0
        %v763 = vadd.f32 %v670, %v759
        %v764 = vadd.f32 %v671, %v761
        %s765 = scalar_lea.vmem %s1, 8
        %v766 = vld [vmem:[%s765] sm:$0x3]
        %v768 = vsel %vm417, %v766, 0
        %v770 = vsel %vm421, %v391, 0
        %v772 = vsel %vm421, %v394, 0
        %774 = vmatprep.subr.mxu0 0.0
        %775 = vmatpush1.msra.mxu0 0.0
        %776 = vmatprep.subr.mxu0 0.0
        %777 = vmatpush1.msra.mxu0 0.0
        %778 = vmatprep.subr.mxu0 0.0
        %779 = vmatpush1.msra.mxu0 0.0
        %780 = vmatprep.subr.mxu0 0.0
        %781 = vmatpush1.msra.mxu0 0.0
        %782 = vmatprep.subr.mxu0 0.0
        %783 = vmatpush1.msra.mxu0 0.0
        %784 = vmatprep.subr.mxu0 0.0
        %785 = vmatpush1.msra.mxu0 0.0
        %786 = vmatprep.subr.mxu0 0.0
        %787 = vmatpush1.msra.mxu0 0.0
        %788 = vmatprep.subr.mxu0 0.0
        %789 = vmatpush1.msra.mxu0 0.0
        %790 = vmatprep.subr.mxu0 0.0
        %791 = vmatpush1.msra.mxu0 0.0
        %792 = vmatprep.subr.mxu0 0.0
        %793 = vmatpush1.msra.mxu0 0.0
        %794 = vmatprep.subr.mxu0 0.0
        %795 = vmatpush1.msra.mxu0 0.0
        %796 = vmatprep.subr.mxu0 0.0
        %797 = vmatpush1.msra.mxu0 0.0
        %798 = vmatprep.subr.mxu0 0.0
        %799 = vmatpush1.msra.mxu0 0.0
        %800 = vmatprep.subr.mxu0 0.0
        %801 = vmatpush1.msra.mxu0 0.0
        %802 = vmatprep.subr.mxu0 0.0
        %803 = vmatpush1.msra.mxu0 0.0
        %804 = vmatprep.subr.mxu0 %v772
        %805 = vmatpush1.msra.mxu0 %v770
        %806 = vmatprep.subr.mxu0 0.0
        %807 = vmatpush2.msra.mxu0 0.0
        %808 = vmatprep.subr.mxu0 0.0
        %809 = vmatpush2.msra.mxu0 0.0
        %810 = vmatprep.subr.mxu0 0.0
        %811 = vmatpush2.msra.mxu0 0.0
        %812 = vmatprep.subr.mxu0 0.0
        %813 = vmatpush2.msra.mxu0 0.0
        %814 = vmatprep.subr.mxu0 0.0
        %815 = vmatpush2.msra.mxu0 0.0
        %816 = vmatprep.subr.mxu0 0.0
        %817 = vmatpush2.msra.mxu0 0.0
        %818 = vmatprep.subr.mxu0 0.0
        %819 = vmatpush2.msra.mxu0 0.0
        %820 = vmatprep.subr.mxu0 0.0
        %821 = vmatpush2.msra.mxu0 0.0
        %822 = vmatprep.subr.mxu0 0.0
        %823 = vmatpush2.msra.mxu0 0.0
        %824 = vmatprep.subr.mxu0 0.0
        %825 = vmatpush2.msra.mxu0 0.0
        %826 = vmatprep.subr.mxu0 0.0
        %827 = vmatpush2.msra.mxu0 0.0
        %828 = vmatprep.subr.mxu0 0.0
        %829 = vmatpush2.msra.mxu0 0.0
        %830 = vmatprep.subr.mxu0 0.0
        %831 = vmatpush2.msra.mxu0 0.0
        %832 = vmatprep.subr.mxu0 0.0
        %833 = vmatpush2.msra.mxu0 0.0
        %834 = vmatprep.subr.mxu0 0.0
        %835 = vmatpush2.msra.mxu0 0.0
        %836 = vmatprep.subr.mxu0 0.0
        %837 = vmatpush2.msra.mxu0 0.0
        %838 = vmatprep.mubr.f32.mxu0 0.0
        %839 = vmatmul.mubr.f32.gmra.mxu0 %v768
        %v840 = vpop.f32.mrf.mxu0
        %v841 = vadd.f32 0.0, %v840
        %v842 = vpop.f32.mrf.mxu0
        %v843 = vadd.f32 0.0, %v842
        %844 = vdwg.mxu0
        %v845 = vadd.f32 %v763, %v841
        %v846 = vadd.f32 %v764, %v843
        %847 = vrot.lane.b32.xlu0 %v391, 127
        %v848 = vpop.permute.xlu0 %847
        %849 = vrot.lane.b32.xlu0 %v394, 127
        %v850 = vpop.permute.xlu0 %849
        %vm851 = vcmp.lt.s32.totalorder %v281, 127
        %v852 = vsel %vm851, %v848, %v850
        %v853 = vsel %vm851, %v850, %v848
        %v854 = vmul.f32 %v852, %v357
        %v855 = vmul.f32 %v853, %v358
        %s856 = scalar_lea.vmem %s1, 10
        %v857 = vld [vmem:[%s856] sm:$0x3]
        %v859 = vsel %vm417, %v857, 0
        %v862 = vsel %vm421, %v854, 0
        %v865 = vsel %vm421, %v855, 0
        %867 = vmatprep.subr.mxu0 0.0
        %868 = vmatpush1.msra.mxu0 0.0
        %869 = vmatprep.subr.mxu0 0.0
        %870 = vmatpush1.msra.mxu0 0.0
        %871 = vmatprep.subr.mxu0 0.0
        %872 = vmatpush1.msra.mxu0 0.0
        %873 = vmatprep.subr.mxu0 0.0
        %874 = vmatpush1.msra.mxu0 0.0
        %875 = vmatprep.subr.mxu0 0.0
        %876 = vmatpush1.msra.mxu0 0.0
        %877 = vmatprep.subr.mxu0 0.0
        %878 = vmatpush1.msra.mxu0 0.0
        %879 = vmatprep.subr.mxu0 0.0
        %880 = vmatpush1.msra.mxu0 0.0
        %881 = vmatprep.subr.mxu0 0.0
        %882 = vmatpush1.msra.mxu0 0.0
        %883 = vmatprep.subr.mxu0 0.0
        %884 = vmatpush1.msra.mxu0 0.0
        %885 = vmatprep.subr.mxu0 0.0
        %886 = vmatpush1.msra.mxu0 0.0
        %887 = vmatprep.subr.mxu0 0.0
        %888 = vmatpush1.msra.mxu0 0.0
        %889 = vmatprep.subr.mxu0 0.0
        %890 = vmatpush1.msra.mxu0 0.0
        %891 = vmatprep.subr.mxu0 0.0
        %892 = vmatpush1.msra.mxu0 0.0
        %893 = vmatprep.subr.mxu0 0.0
        %894 = vmatpush1.msra.mxu0 0.0
        %895 = vmatprep.subr.mxu0 0.0
        %896 = vmatpush1.msra.mxu0 0.0
        %897 = vmatprep.subr.mxu0 %v865
        %898 = vmatpush1.msra.mxu0 %v862
        %899 = vmatprep.subr.mxu0 0.0
        %900 = vmatpush2.msra.mxu0 0.0
        %901 = vmatprep.subr.mxu0 0.0
        %902 = vmatpush2.msra.mxu0 0.0
        %903 = vmatprep.subr.mxu0 0.0
        %904 = vmatpush2.msra.mxu0 0.0
        %905 = vmatprep.subr.mxu0 0.0
        %906 = vmatpush2.msra.mxu0 0.0
        %907 = vmatprep.subr.mxu0 0.0
        %908 = vmatpush2.msra.mxu0 0.0
        %909 = vmatprep.subr.mxu0 0.0
        %910 = vmatpush2.msra.mxu0 0.0
        %911 = vmatprep.subr.mxu0 0.0
        %912 = vmatpush2.msra.mxu0 0.0
        %913 = vmatprep.subr.mxu0 0.0
        %914 = vmatpush2.msra.mxu0 0.0
        %915 = vmatprep.subr.mxu0 0.0
        %916 = vmatpush2.msra.mxu0 0.0
        %917 = vmatprep.subr.mxu0 0.0
        %918 = vmatpush2.msra.mxu0 0.0
        %919 = vmatprep.subr.mxu0 0.0
        %920 = vmatpush2.msra.mxu0 0.0
        %921 = vmatprep.subr.mxu0 0.0
        %922 = vmatpush2.msra.mxu0 0.0
        %923 = vmatprep.subr.mxu0 0.0
        %924 = vmatpush2.msra.mxu0 0.0
        %925 = vmatprep.subr.mxu0 0.0
        %926 = vmatpush2.msra.mxu0 0.0
        %927 = vmatprep.subr.mxu0 0.0
        %928 = vmatpush2.msra.mxu0 0.0
        %929 = vmatprep.subr.mxu0 0.0
        %930 = vmatpush2.msra.mxu0 0.0
        %931 = vmatprep.mubr.f32.mxu0 0.0
        %932 = vmatmul.mubr.f32.gmra.mxu0 %v859
        %v933 = vpop.f32.mrf.mxu0
        %v934 = vadd.f32 0.0, %v933
        %v935 = vpop.f32.mrf.mxu0
        %v936 = vadd.f32 0.0, %v935
        %937 = vdwg.mxu0
        %v938 = vadd.f32 %v845, %v934
        %v939 = vadd.f32 %v846, %v936
        %940 = vrot.lane.b32.xlu0 %v391, 113
        %v941 = vpop.permute.xlu0 %940
        %942 = vrot.lane.b32.xlu0 %v394, 113
        %v943 = vpop.permute.xlu0 %942
        %vm944 = vcmp.lt.s32.totalorder %v281, 113
        %v945 = vsel %vm944, %v941, %v943
        %v946 = vsel %vm944, %v943, %v941
        %v947 = vmul.f32 %v945, %v373
        %v948 = vmul.f32 %v946, %v374
        %s949 = scalar_lea.vmem %s1, 12
        %v950 = vld [vmem:[%s949] sm:$0x3]
        %v952 = vsel %vm417, %v950, 0
        %v955 = vsel %vm421, %v947, 0
        %v958 = vsel %vm421, %v948, 0
        %960 = vmatprep.subr.mxu0 0.0
        %961 = vmatpush1.msra.mxu0 0.0
        %962 = vmatprep.subr.mxu0 0.0
        %963 = vmatpush1.msra.mxu0 0.0
        %964 = vmatprep.subr.mxu0 0.0
        %965 = vmatpush1.msra.mxu0 0.0
        %966 = vmatprep.subr.mxu0 0.0
        %967 = vmatpush1.msra.mxu0 0.0
        %968 = vmatprep.subr.mxu0 0.0
        %969 = vmatpush1.msra.mxu0 0.0
        %970 = vmatprep.subr.mxu0 0.0
        %971 = vmatpush1.msra.mxu0 0.0
        %972 = vmatprep.subr.mxu0 0.0
        %973 = vmatpush1.msra.mxu0 0.0
        %974 = vmatprep.subr.mxu0 0.0
        %975 = vmatpush1.msra.mxu0 0.0
        %976 = vmatprep.subr.mxu0 0.0
        %977 = vmatpush1.msra.mxu0 0.0
        %978 = vmatprep.subr.mxu0 0.0
        %979 = vmatpush1.msra.mxu0 0.0
        %980 = vmatprep.subr.mxu0 0.0
        %981 = vmatpush1.msra.mxu0 0.0
        %982 = vmatprep.subr.mxu0 0.0
        %983 = vmatpush1.msra.mxu0 0.0
        %984 = vmatprep.subr.mxu0 0.0
        %985 = vmatpush1.msra.mxu0 0.0
        %986 = vmatprep.subr.mxu0 0.0
        %987 = vmatpush1.msra.mxu0 0.0
        %988 = vmatprep.subr.mxu0 0.0
        %989 = vmatpush1.msra.mxu0 0.0
        %990 = vmatprep.subr.mxu0 %v958
        %991 = vmatpush1.msra.mxu0 %v955
        %992 = vmatprep.subr.mxu0 0.0
        %993 = vmatpush2.msra.mxu0 0.0
        %994 = vmatprep.subr.mxu0 0.0
        %995 = vmatpush2.msra.mxu0 0.0
        %996 = vmatprep.subr.mxu0 0.0
        %997 = vmatpush2.msra.mxu0 0.0
        %998 = vmatprep.subr.mxu0 0.0
        %999 = vmatpush2.msra.mxu0 0.0
        %1000 = vmatprep.subr.mxu0 0.0
        %1001 = vmatpush2.msra.mxu0 0.0
        %1002 = vmatprep.subr.mxu0 0.0
        %1003 = vmatpush2.msra.mxu0 0.0
        %1004 = vmatprep.subr.mxu0 0.0
        %1005 = vmatpush2.msra.mxu0 0.0
        %1006 = vmatprep.subr.mxu0 0.0
        %1007 = vmatpush2.msra.mxu0 0.0
        %1008 = vmatprep.subr.mxu0 0.0
        %1009 = vmatpush2.msra.mxu0 0.0
        %1010 = vmatprep.subr.mxu0 0.0
        %1011 = vmatpush2.msra.mxu0 0.0
        %1012 = vmatprep.subr.mxu0 0.0
        %1013 = vmatpush2.msra.mxu0 0.0
        %1014 = vmatprep.subr.mxu0 0.0
        %1015 = vmatpush2.msra.mxu0 0.0
        %1016 = vmatprep.subr.mxu0 0.0
        %1017 = vmatpush2.msra.mxu0 0.0
        %1018 = vmatprep.subr.mxu0 0.0
        %1019 = vmatpush2.msra.mxu0 0.0
        %1020 = vmatprep.subr.mxu0 0.0
        %1021 = vmatpush2.msra.mxu0 0.0
        %1022 = vmatprep.subr.mxu0 0.0
        %1023 = vmatpush2.msra.mxu0 0.0
        %1024 = vmatprep.mubr.f32.mxu0 0.0
        %1025 = vmatmul.mubr.f32.gmra.mxu0 %v952
        %v1026 = vpop.f32.mrf.mxu0
        %v1027 = vadd.f32 0.0, %v1026
        %v1028 = vpop.f32.mrf.mxu0
        %v1029 = vadd.f32 0.0, %v1028
        %1030 = vdwg.mxu0
        %v1031 = vadd.f32 %v938, %v1027
        %v1032 = vadd.f32 %v939, %v1029
        %1033 = vrot.lane.b32.xlu0 %v391, 112
        %v1034 = vpop.permute.xlu0 %1033
        %1035 = vrot.lane.b32.xlu0 %v394, 112
        %v1036 = vpop.permute.xlu0 %1035
        %vm1037 = vcmp.lt.s32.totalorder %v281, 112
        %v1038 = vsel %vm1037, %v1034, %v1036
        %v1039 = vsel %vm1037, %v1036, %v1034
        %v1040 = vmul.f32 %v1038, %v381
        %v1041 = vmul.f32 %v1039, %v382
        %s1042 = scalar_lea.vmem %s1, 14
        %v1043 = vld [vmem:[%s1042] sm:$0x3]
        %v1045 = vsel %vm417, %v1043, 0
        %v1048 = vsel %vm421, %v1040, 0
        %v1051 = vsel %vm421, %v1041, 0
        %1053 = vmatprep.subr.mxu0 0.0
        %1054 = vmatpush1.msra.mxu0 0.0
        %1055 = vmatprep.subr.mxu0 0.0
        %1056 = vmatpush1.msra.mxu0 0.0
        %1057 = vmatprep.subr.mxu0 0.0
        %1058 = vmatpush1.msra.mxu0 0.0
        %1059 = vmatprep.subr.mxu0 0.0
        %1060 = vmatpush1.msra.mxu0 0.0
        %1061 = vmatprep.subr.mxu0 0.0
        %1062 = vmatpush1.msra.mxu0 0.0
        %1063 = vmatprep.subr.mxu0 0.0
        %1064 = vmatpush1.msra.mxu0 0.0
        %1065 = vmatprep.subr.mxu0 0.0
        %1066 = vmatpush1.msra.mxu0 0.0
        %1067 = vmatprep.subr.mxu0 0.0
        %1068 = vmatpush1.msra.mxu0 0.0
        %1069 = vmatprep.subr.mxu0 0.0
        %1070 = vmatpush1.msra.mxu0 0.0
        %1071 = vmatprep.subr.mxu0 0.0
        %1072 = vmatpush1.msra.mxu0 0.0
        %1073 = vmatprep.subr.mxu0 0.0
        %1074 = vmatpush1.msra.mxu0 0.0
        %1075 = vmatprep.subr.mxu0 0.0
        %1076 = vmatpush1.msra.mxu0 0.0
        %1077 = vmatprep.subr.mxu0 0.0
        %1078 = vmatpush1.msra.mxu0 0.0
        %1079 = vmatprep.subr.mxu0 0.0
        %1080 = vmatpush1.msra.mxu0 0.0
        %1081 = vmatprep.subr.mxu0 0.0
        %1082 = vmatpush1.msra.mxu0 0.0
        %1083 = vmatprep.subr.mxu0 %v1051
        %1084 = vmatpush1.msra.mxu0 %v1048
        %1085 = vmatprep.subr.mxu0 0.0
        %1086 = vmatpush2.msra.mxu0 0.0
        %1087 = vmatprep.subr.mxu0 0.0
        %1088 = vmatpush2.msra.mxu0 0.0
        %1089 = vmatprep.subr.mxu0 0.0
        %1090 = vmatpush2.msra.mxu0 0.0
        %1091 = vmatprep.subr.mxu0 0.0
        %1092 = vmatpush2.msra.mxu0 0.0
        %1093 = vmatprep.subr.mxu0 0.0
        %1094 = vmatpush2.msra.mxu0 0.0
        %1095 = vmatprep.subr.mxu0 0.0
        %1096 = vmatpush2.msra.mxu0 0.0
        %1097 = vmatprep.subr.mxu0 0.0
        %1098 = vmatpush2.msra.mxu0 0.0
        %1099 = vmatprep.subr.mxu0 0.0
        %1100 = vmatpush2.msra.mxu0 0.0
        %1101 = vmatprep.subr.mxu0 0.0
        %1102 = vmatpush2.msra.mxu0 0.0
        %1103 = vmatprep.subr.mxu0 0.0
        %1104 = vmatpush2.msra.mxu0 0.0
        %1105 = vmatprep.subr.mxu0 0.0
        %1106 = vmatpush2.msra.mxu0 0.0
        %1107 = vmatprep.subr.mxu0 0.0
        %1108 = vmatpush2.msra.mxu0 0.0
        %1109 = vmatprep.subr.mxu0 0.0
        %1110 = vmatpush2.msra.mxu0 0.0
        %1111 = vmatprep.subr.mxu0 0.0
        %1112 = vmatpush2.msra.mxu0 0.0
        %1113 = vmatprep.subr.mxu0 0.0
        %1114 = vmatpush2.msra.mxu0 0.0
        %1115 = vmatprep.subr.mxu0 0.0
        %1116 = vmatpush2.msra.mxu0 0.0
        %1117 = vmatprep.mubr.f32.mxu0 0.0
        %1118 = vmatmul.mubr.f32.gmra.mxu0 %v1045
        %v1119 = vpop.f32.mrf.mxu0
        %v1120 = vadd.f32 0.0, %v1119
        %v1121 = vpop.f32.mrf.mxu0
        %v1122 = vadd.f32 0.0, %v1121
        %1123 = vdwg.mxu0
        %v1124 = vadd.f32 %v1031, %v1120
        %v1125 = vadd.f32 %v1032, %v1122
        %1126 = vrot.lane.b32.xlu0 %v391, 111
        %v1127 = vpop.permute.xlu0 %1126
        %1128 = vrot.lane.b32.xlu0 %v394, 111
        %v1129 = vpop.permute.xlu0 %1128
        %vm1130 = vcmp.lt.s32.totalorder %v281, 111
        %v1131 = vsel %vm1130, %v1127, %v1129
        %v1132 = vsel %vm1130, %v1129, %v1127
        %v1133 = vmul.f32 %v1131, %v389
        %v1134 = vmul.f32 %v1132, %v390
        %s1135 = scalar_lea.vmem %s1, 16
        %v1136 = vld [vmem:[%s1135] sm:$0x3]
        %v1138 = vsel %vm417, %v1136, 0
        %v1141 = vsel %vm421, %v1133, 0
        %v1144 = vsel %vm421, %v1134, 0
        %1146 = vmatprep.subr.mxu0 0.0
        %1147 = vmatpush1.msra.mxu0 0.0
        %1148 = vmatprep.subr.mxu0 0.0
        %1149 = vmatpush1.msra.mxu0 0.0
        %1150 = vmatprep.subr.mxu0 0.0
        %1151 = vmatpush1.msra.mxu0 0.0
        %1152 = vmatprep.subr.mxu0 0.0
        %1153 = vmatpush1.msra.mxu0 0.0
        %1154 = vmatprep.subr.mxu0 0.0
        %1155 = vmatpush1.msra.mxu0 0.0
        %1156 = vmatprep.subr.mxu0 0.0
        %1157 = vmatpush1.msra.mxu0 0.0
        %1158 = vmatprep.subr.mxu0 0.0
        %1159 = vmatpush1.msra.mxu0 0.0
        %1160 = vmatprep.subr.mxu0 0.0
        %1161 = vmatpush1.msra.mxu0 0.0
        %1162 = vmatprep.subr.mxu0 0.0
        %1163 = vmatpush1.msra.mxu0 0.0
        %1164 = vmatprep.subr.mxu0 0.0
        %1165 = vmatpush1.msra.mxu0 0.0
        %1166 = vmatprep.subr.mxu0 0.0
        %1167 = vmatpush1.msra.mxu0 0.0
        %1168 = vmatprep.subr.mxu0 0.0
        %1169 = vmatpush1.msra.mxu0 0.0
        %1170 = vmatprep.subr.mxu0 0.0
        %1171 = vmatpush1.msra.mxu0 0.0
        %1172 = vmatprep.subr.mxu0 0.0
        %1173 = vmatpush1.msra.mxu0 0.0
        %1174 = vmatprep.subr.mxu0 0.0
        %1175 = vmatpush1.msra.mxu0 0.0
        %1176 = vmatprep.subr.mxu0 %v1144
        %1177 = vmatpush1.msra.mxu0 %v1141
        %1178 = vmatprep.subr.mxu0 0.0
        %1179 = vmatpush2.msra.mxu0 0.0
        %1180 = vmatprep.subr.mxu0 0.0
        %1181 = vmatpush2.msra.mxu0 0.0
        %1182 = vmatprep.subr.mxu0 0.0
        %1183 = vmatpush2.msra.mxu0 0.0
        %1184 = vmatprep.subr.mxu0 0.0
        %1185 = vmatpush2.msra.mxu0 0.0
        %1186 = vmatprep.subr.mxu0 0.0
        %1187 = vmatpush2.msra.mxu0 0.0
        %1188 = vmatprep.subr.mxu0 0.0
        %1189 = vmatpush2.msra.mxu0 0.0
        %1190 = vmatprep.subr.mxu0 0.0
        %1191 = vmatpush2.msra.mxu0 0.0
        %1192 = vmatprep.subr.mxu0 0.0
        %1193 = vmatpush2.msra.mxu0 0.0
        %1194 = vmatprep.subr.mxu0 0.0
        %1195 = vmatpush2.msra.mxu0 0.0
        %1196 = vmatprep.subr.mxu0 0.0
        %1197 = vmatpush2.msra.mxu0 0.0
        %1198 = vmatprep.subr.mxu0 0.0
        %1199 = vmatpush2.msra.mxu0 0.0
        %1200 = vmatprep.subr.mxu0 0.0
        %1201 = vmatpush2.msra.mxu0 0.0
        %1202 = vmatprep.subr.mxu0 0.0
        %1203 = vmatpush2.msra.mxu0 0.0
        %1204 = vmatprep.subr.mxu0 0.0
        %1205 = vmatpush2.msra.mxu0 0.0
        %1206 = vmatprep.subr.mxu0 0.0
        %1207 = vmatpush2.msra.mxu0 0.0
        %1208 = vmatprep.subr.mxu0 0.0
        %1209 = vmatpush2.msra.mxu0 0.0
        %1210 = vmatprep.mubr.f32.mxu0 0.0
        %1211 = vmatmul.mubr.f32.gmra.mxu0 %v1138
        %v1212 = vpop.f32.mrf.mxu0
        %v1213 = vadd.f32 0.0, %v1212
        %v1214 = vpop.f32.mrf.mxu0
        %v1215 = vadd.f32 0.0, %v1214
        %1216 = vdwg.mxu0
        %v1217 = vadd.f32 %v1124, %v1213
        %v1218 = vadd.f32 %v1125, %v1215
        %1220 = vset.pattern.permute.xlu0 0
        %1221 = vperm.xlu0 %1220, %v392
        %v1222 = vpop.permute.xlu0 %1221
        %v1224 = vadd.f32 %v1217, %v1222
        %v1225 = vadd.f32 %v1218, %v1222
        %v1226 = vmax.f32 %v1224, 0.0
        %v1227 = vmax.f32 %v1225, 0.0
        %v1228 = vld [vmem:[%s4] sm:$0x3]
        %1229 = vrot.lane.b32.xlu0 %v1226, 17
        %v1230 = vpop.permute.xlu0 %1229
        %1231 = vrot.lane.b32.xlu0 %v1227, 17
        %v1232 = vpop.permute.xlu0 %1231
        %v1233 = vsel %vm400, %v1230, %v1232
        %v1234 = vsel %vm400, %v1232, %v1230
        %v1235 = vmul.f32 %v1234, %v309
        %v1236 = vmul.f32 %v1233, %v310
        %v1237 = vld [vmem:[%s3] sm:$0x3]
        %1238 = vrot.lane.b32.xlu0 %v1226, 16
        %v1239 = vpop.permute.xlu0 %1238
        %1240 = vrot.lane.b32.xlu0 %v1227, 16
        %v1241 = vpop.permute.xlu0 %1240
        %v1242 = vsel %vm410, %v1239, %v1241
        %v1243 = vsel %vm410, %v1241, %v1239
        %v1244 = vmul.f32 %v1243, %v321
        %v1245 = vmul.f32 %v1242, %v322
        %s1246 = scalar_lea.vmem %s3, 2
        %v1247 = vld [vmem:[%s1246] sm:$0x3]
        %vm1248 = vcmask 15360
        %v1250 = vsel %vm1248, %v1247, 0
        %vm1252 = vcmask 1041408
        %v1254 = vsel %vm1252, %v1244, 0
        %v1257 = vsel %vm1252, %v1245, 0
        %1259 = vmatprep.subr.mxu0 0.0
        %1260 = vmatpush1.msra.mxu0 0.0
        %1261 = vmatprep.subr.mxu0 0.0
        %1262 = vmatpush1.msra.mxu0 0.0
        %1263 = vmatprep.subr.mxu0 0.0
        %1264 = vmatpush1.msra.mxu0 0.0
        %1265 = vmatprep.subr.mxu0 0.0
        %1266 = vmatpush1.msra.mxu0 0.0
        %1267 = vmatprep.subr.mxu0 0.0
        %1268 = vmatpush1.msra.mxu0 0.0
        %1269 = vmatprep.subr.mxu0 0.0
        %1270 = vmatpush1.msra.mxu0 0.0
        %1271 = vmatprep.subr.mxu0 0.0
        %1272 = vmatpush1.msra.mxu0 0.0
        %1273 = vmatprep.subr.mxu0 0.0
        %1274 = vmatpush1.msra.mxu0 0.0
        %1275 = vmatprep.subr.mxu0 0.0
        %1276 = vmatpush1.msra.mxu0 0.0
        %1277 = vmatprep.subr.mxu0 0.0
        %1278 = vmatpush1.msra.mxu0 0.0
        %1279 = vmatprep.subr.mxu0 0.0
        %1280 = vmatpush1.msra.mxu0 0.0
        %1281 = vmatprep.subr.mxu0 0.0
        %1282 = vmatpush1.msra.mxu0 0.0
        %1283 = vmatprep.subr.mxu0 0.0
        %1284 = vmatpush1.msra.mxu0 0.0
        %1285 = vmatprep.subr.mxu0 0.0
        %1286 = vmatpush1.msra.mxu0 0.0
        %1287 = vmatprep.subr.mxu0 0.0
        %1288 = vmatpush1.msra.mxu0 0.0
        %1289 = vmatprep.subr.mxu0 %v1257
        %1290 = vmatpush1.msra.mxu0 %v1254
        %1291 = vmatprep.subr.mxu0 0.0
        %1292 = vmatpush2.msra.mxu0 0.0
        %1293 = vmatprep.subr.mxu0 0.0
        %1294 = vmatpush2.msra.mxu0 0.0
        %1295 = vmatprep.subr.mxu0 0.0
        %1296 = vmatpush2.msra.mxu0 0.0
        %1297 = vmatprep.subr.mxu0 0.0
        %1298 = vmatpush2.msra.mxu0 0.0
        %1299 = vmatprep.subr.mxu0 0.0
        %1300 = vmatpush2.msra.mxu0 0.0
        %1301 = vmatprep.subr.mxu0 0.0
        %1302 = vmatpush2.msra.mxu0 0.0
        %1303 = vmatprep.subr.mxu0 0.0
        %1304 = vmatpush2.msra.mxu0 0.0
        %1305 = vmatprep.subr.mxu0 0.0
        %1306 = vmatpush2.msra.mxu0 0.0
        %1307 = vmatprep.subr.mxu0 0.0
        %1308 = vmatpush2.msra.mxu0 0.0
        %1309 = vmatprep.subr.mxu0 0.0
        %1310 = vmatpush2.msra.mxu0 0.0
        %1311 = vmatprep.subr.mxu0 0.0
        %1312 = vmatpush2.msra.mxu0 0.0
        %1313 = vmatprep.subr.mxu0 0.0
        %1314 = vmatpush2.msra.mxu0 0.0
        %1315 = vmatprep.subr.mxu0 0.0
        %1316 = vmatpush2.msra.mxu0 0.0
        %1317 = vmatprep.subr.mxu0 0.0
        %1318 = vmatpush2.msra.mxu0 0.0
        %1319 = vmatprep.subr.mxu0 0.0
        %1320 = vmatpush2.msra.mxu0 0.0
        %1321 = vmatprep.subr.mxu0 0.0
        %1322 = vmatpush2.msra.mxu0 0.0
        %1323 = vmatprep.mubr.f32.mxu0 0.0
        %1324 = vmatmul.mubr.f32.gmra.mxu0 %v1250
        %v1325 = vpop.f32.mrf.mxu0
        %v1326 = vadd.f32 0.0, %v1325
        %v1327 = vpop.f32.mrf.mxu0
        %v1328 = vadd.f32 0.0, %v1327
        %1329 = vdwg.mxu0
        %v1331 = vsel %vm1248, %v1237, 0
        %v1334 = vsel %vm1252, %v1235, 0
        %v1337 = vsel %vm1252, %v1236, 0
        %1339 = vmatprep.subr.mxu0 0.0
        %1340 = vmatpush1.msra.mxu0 0.0
        %1341 = vmatprep.subr.mxu0 0.0
        %1342 = vmatpush1.msra.mxu0 0.0
        %1343 = vmatprep.subr.mxu0 0.0
        %1344 = vmatpush1.msra.mxu0 0.0
        %1345 = vmatprep.subr.mxu0 0.0
        %1346 = vmatpush1.msra.mxu0 0.0
        %1347 = vmatprep.subr.mxu0 0.0
        %1348 = vmatpush1.msra.mxu0 0.0
        %1349 = vmatprep.subr.mxu0 0.0
        %1350 = vmatpush1.msra.mxu0 0.0
        %1351 = vmatprep.subr.mxu0 0.0
        %1352 = vmatpush1.msra.mxu0 0.0
        %1353 = vmatprep.subr.mxu0 0.0
        %1354 = vmatpush1.msra.mxu0 0.0
        %1355 = vmatprep.subr.mxu0 0.0
        %1356 = vmatpush1.msra.mxu0 0.0
        %1357 = vmatprep.subr.mxu0 0.0
        %1358 = vmatpush1.msra.mxu0 0.0
        %1359 = vmatprep.subr.mxu0 0.0
        %1360 = vmatpush1.msra.mxu0 0.0
        %1361 = vmatprep.subr.mxu0 0.0
        %1362 = vmatpush1.msra.mxu0 0.0
        %1363 = vmatprep.subr.mxu0 0.0
        %1364 = vmatpush1.msra.mxu0 0.0
        %1365 = vmatprep.subr.mxu0 0.0
        %1366 = vmatpush1.msra.mxu0 0.0
        %1367 = vmatprep.subr.mxu0 0.0
        %1368 = vmatpush1.msra.mxu0 0.0
        %1369 = vmatprep.subr.mxu0 %v1337
        %1370 = vmatpush1.msra.mxu0 %v1334
        %1371 = vmatprep.subr.mxu0 0.0
        %1372 = vmatpush2.msra.mxu0 0.0
        %1373 = vmatprep.subr.mxu0 0.0
        %1374 = vmatpush2.msra.mxu0 0.0
        %1375 = vmatprep.subr.mxu0 0.0
        %1376 = vmatpush2.msra.mxu0 0.0
        %1377 = vmatprep.subr.mxu0 0.0
        %1378 = vmatpush2.msra.mxu0 0.0
        %1379 = vmatprep.subr.mxu0 0.0
        %1380 = vmatpush2.msra.mxu0 0.0
        %1381 = vmatprep.subr.mxu0 0.0
        %1382 = vmatpush2.msra.mxu0 0.0
        %1383 = vmatprep.subr.mxu0 0.0
        %1384 = vmatpush2.msra.mxu0 0.0
        %1385 = vmatprep.subr.mxu0 0.0
        %1386 = vmatpush2.msra.mxu0 0.0
        %1387 = vmatprep.subr.mxu0 0.0
        %1388 = vmatpush2.msra.mxu0 0.0
        %1389 = vmatprep.subr.mxu0 0.0
        %1390 = vmatpush2.msra.mxu0 0.0
        %1391 = vmatprep.subr.mxu0 0.0
        %1392 = vmatpush2.msra.mxu0 0.0
        %1393 = vmatprep.subr.mxu0 0.0
        %1394 = vmatpush2.msra.mxu0 0.0
        %1395 = vmatprep.subr.mxu0 0.0
        %1396 = vmatpush2.msra.mxu0 0.0
        %1397 = vmatprep.subr.mxu0 0.0
        %1398 = vmatpush2.msra.mxu0 0.0
        %1399 = vmatprep.subr.mxu0 0.0
        %1400 = vmatpush2.msra.mxu0 0.0
        %1401 = vmatprep.subr.mxu0 0.0
        %1402 = vmatpush2.msra.mxu0 0.0
        %1403 = vmatprep.mubr.f32.mxu0 0.0
        %1404 = vmatmul.mubr.f32.gmra.mxu0 %v1331
        %v1405 = vpop.f32.mrf.mxu0
        %v1406 = vadd.f32 %v1326, %v1405
        %v1407 = vpop.f32.mrf.mxu0
        %v1408 = vadd.f32 %v1328, %v1407
        %1409 = vdwg.mxu0
        %1410 = vrot.lane.b32.xlu0 %v1226, 15
        %v1411 = vpop.permute.xlu0 %1410
        %1412 = vrot.lane.b32.xlu0 %v1227, 15
        %v1413 = vpop.permute.xlu0 %1412
        %v1414 = vsel %vm583, %v1411, %v1413
        %v1415 = vsel %vm583, %v1413, %v1411
        %v1416 = vmul.f32 %v1415, %v335
        %v1417 = vmul.f32 %v1414, %v336
        %s1418 = scalar_lea.vmem %s3, 4
        %v1419 = vld [vmem:[%s1418] sm:$0x3]
        %v1421 = vsel %vm1248, %v1419, 0
        %v1424 = vsel %vm1252, %v1416, 0
        %v1427 = vsel %vm1252, %v1417, 0
        %1429 = vmatprep.subr.mxu0 0.0
        %1430 = vmatpush1.msra.mxu0 0.0
        %1431 = vmatprep.subr.mxu0 0.0
        %1432 = vmatpush1.msra.mxu0 0.0
        %1433 = vmatprep.subr.mxu0 0.0
        %1434 = vmatpush1.msra.mxu0 0.0
        %1435 = vmatprep.subr.mxu0 0.0
        %1436 = vmatpush1.msra.mxu0 0.0
        %1437 = vmatprep.subr.mxu0 0.0
        %1438 = vmatpush1.msra.mxu0 0.0
        %1439 = vmatprep.subr.mxu0 0.0
        %1440 = vmatpush1.msra.mxu0 0.0
        %1441 = vmatprep.subr.mxu0 0.0
        %1442 = vmatpush1.msra.mxu0 0.0
        %1443 = vmatprep.subr.mxu0 0.0
        %1444 = vmatpush1.msra.mxu0 0.0
        %1445 = vmatprep.subr.mxu0 0.0
        %1446 = vmatpush1.msra.mxu0 0.0
        %1447 = vmatprep.subr.mxu0 0.0
        %1448 = vmatpush1.msra.mxu0 0.0
        %1449 = vmatprep.subr.mxu0 0.0
        %1450 = vmatpush1.msra.mxu0 0.0
        %1451 = vmatprep.subr.mxu0 0.0
        %1452 = vmatpush1.msra.mxu0 0.0
        %1453 = vmatprep.subr.mxu0 0.0
        %1454 = vmatpush1.msra.mxu0 0.0
        %1455 = vmatprep.subr.mxu0 0.0
        %1456 = vmatpush1.msra.mxu0 0.0
        %1457 = vmatprep.subr.mxu0 0.0
        %1458 = vmatpush1.msra.mxu0 0.0
        %1459 = vmatprep.subr.mxu0 %v1427
        %1460 = vmatpush1.msra.mxu0 %v1424
        %1461 = vmatprep.subr.mxu0 0.0
        %1462 = vmatpush2.msra.mxu0 0.0
        %1463 = vmatprep.subr.mxu0 0.0
        %1464 = vmatpush2.msra.mxu0 0.0
        %1465 = vmatprep.subr.mxu0 0.0
        %1466 = vmatpush2.msra.mxu0 0.0
        %1467 = vmatprep.subr.mxu0 0.0
        %1468 = vmatpush2.msra.mxu0 0.0
        %1469 = vmatprep.subr.mxu0 0.0
        %1470 = vmatpush2.msra.mxu0 0.0
        %1471 = vmatprep.subr.mxu0 0.0
        %1472 = vmatpush2.msra.mxu0 0.0
        %1473 = vmatprep.subr.mxu0 0.0
        %1474 = vmatpush2.msra.mxu0 0.0
        %1475 = vmatprep.subr.mxu0 0.0
        %1476 = vmatpush2.msra.mxu0 0.0
        %1477 = vmatprep.subr.mxu0 0.0
        %1478 = vmatpush2.msra.mxu0 0.0
        %1479 = vmatprep.subr.mxu0 0.0
        %1480 = vmatpush2.msra.mxu0 0.0
        %1481 = vmatprep.subr.mxu0 0.0
        %1482 = vmatpush2.msra.mxu0 0.0
        %1483 = vmatprep.subr.mxu0 0.0
        %1484 = vmatpush2.msra.mxu0 0.0
        %1485 = vmatprep.subr.mxu0 0.0
        %1486 = vmatpush2.msra.mxu0 0.0
        %1487 = vmatprep.subr.mxu0 0.0
        %1488 = vmatpush2.msra.mxu0 0.0
        %1489 = vmatprep.subr.mxu0 0.0
        %1490 = vmatpush2.msra.mxu0 0.0
        %1491 = vmatprep.subr.mxu0 0.0
        %1492 = vmatpush2.msra.mxu0 0.0
        %1493 = vmatprep.mubr.f32.mxu0 0.0
        %1494 = vmatmul.mubr.f32.gmra.mxu0 %v1421
        %v1495 = vpop.f32.mrf.mxu0
        %v1496 = vadd.f32 0.0, %v1495
        %v1497 = vpop.f32.mrf.mxu0
        %v1498 = vadd.f32 0.0, %v1497
        %1499 = vdwg.mxu0
        %v1500 = vadd.f32 %v1406, %v1496
        %v1501 = vadd.f32 %v1408, %v1498
        %1502 = vrot.lane.b32.xlu0 %v1226, 1
        %v1503 = vpop.permute.xlu0 %1502
        %1504 = vrot.lane.b32.xlu0 %v1227, 1
        %v1505 = vpop.permute.xlu0 %1504
        %v1506 = vsel %vm676, %v1503, %v1505
        %v1507 = vsel %vm676, %v1505, %v1503
        %v1508 = vmul.f32 %v1507, %v349
        %v1509 = vmul.f32 %v1506, %v350
        %s1510 = scalar_lea.vmem %s3, 6
        %v1511 = vld [vmem:[%s1510] sm:$0x3]
        %v1513 = vsel %vm1248, %v1511, 0
        %v1516 = vsel %vm1252, %v1508, 0
        %v1519 = vsel %vm1252, %v1509, 0
        %1521 = vmatprep.subr.mxu0 0.0
        %1522 = vmatpush1.msra.mxu0 0.0
        %1523 = vmatprep.subr.mxu0 0.0
        %1524 = vmatpush1.msra.mxu0 0.0
        %1525 = vmatprep.subr.mxu0 0.0
        %1526 = vmatpush1.msra.mxu0 0.0
        %1527 = vmatprep.subr.mxu0 0.0
        %1528 = vmatpush1.msra.mxu0 0.0
        %1529 = vmatprep.subr.mxu0 0.0
        %1530 = vmatpush1.msra.mxu0 0.0
        %1531 = vmatprep.subr.mxu0 0.0
        %1532 = vmatpush1.msra.mxu0 0.0
        %1533 = vmatprep.subr.mxu0 0.0
        %1534 = vmatpush1.msra.mxu0 0.0
        %1535 = vmatprep.subr.mxu0 0.0
        %1536 = vmatpush1.msra.mxu0 0.0
        %1537 = vmatprep.subr.mxu0 0.0
        %1538 = vmatpush1.msra.mxu0 0.0
        %1539 = vmatprep.subr.mxu0 0.0
        %1540 = vmatpush1.msra.mxu0 0.0
        %1541 = vmatprep.subr.mxu0 0.0
        %1542 = vmatpush1.msra.mxu0 0.0
        %1543 = vmatprep.subr.mxu0 0.0
        %1544 = vmatpush1.msra.mxu0 0.0
        %1545 = vmatprep.subr.mxu0 0.0
        %1546 = vmatpush1.msra.mxu0 0.0
        %1547 = vmatprep.subr.mxu0 0.0
        %1548 = vmatpush1.msra.mxu0 0.0
        %1549 = vmatprep.subr.mxu0 0.0
        %1550 = vmatpush1.msra.mxu0 0.0
        %1551 = vmatprep.subr.mxu0 %v1519
        %1552 = vmatpush1.msra.mxu0 %v1516
        %1553 = vmatprep.subr.mxu0 0.0
        %1554 = vmatpush2.msra.mxu0 0.0
        %1555 = vmatprep.subr.mxu0 0.0
        %1556 = vmatpush2.msra.mxu0 0.0
        %1557 = vmatprep.subr.mxu0 0.0
        %1558 = vmatpush2.msra.mxu0 0.0
        %1559 = vmatprep.subr.mxu0 0.0
        %1560 = vmatpush2.msra.mxu0 0.0
        %1561 = vmatprep.subr.mxu0 0.0
        %1562 = vmatpush2.msra.mxu0 0.0
        %1563 = vmatprep.subr.mxu0 0.0
        %1564 = vmatpush2.msra.mxu0 0.0
        %1565 = vmatprep.subr.mxu0 0.0
        %1566 = vmatpush2.msra.mxu0 0.0
        %1567 = vmatprep.subr.mxu0 0.0
        %1568 = vmatpush2.msra.mxu0 0.0
        %1569 = vmatprep.subr.mxu0 0.0
        %1570 = vmatpush2.msra.mxu0 0.0
        %1571 = vmatprep.subr.mxu0 0.0
        %1572 = vmatpush2.msra.mxu0 0.0
        %1573 = vmatprep.subr.mxu0 0.0
        %1574 = vmatpush2.msra.mxu0 0.0
        %1575 = vmatprep.subr.mxu0 0.0
        %1576 = vmatpush2.msra.mxu0 0.0
        %1577 = vmatprep.subr.mxu0 0.0
        %1578 = vmatpush2.msra.mxu0 0.0
        %1579 = vmatprep.subr.mxu0 0.0
        %1580 = vmatpush2.msra.mxu0 0.0
        %1581 = vmatprep.subr.mxu0 0.0
        %1582 = vmatpush2.msra.mxu0 0.0
        %1583 = vmatprep.subr.mxu0 0.0
        %1584 = vmatpush2.msra.mxu0 0.0
        %1585 = vmatprep.mubr.f32.mxu0 0.0
        %1586 = vmatmul.mubr.f32.gmra.mxu0 %v1513
        %v1587 = vpop.f32.mrf.mxu0
        %v1588 = vadd.f32 0.0, %v1587
        %v1589 = vpop.f32.mrf.mxu0
        %v1590 = vadd.f32 0.0, %v1589
        %1591 = vdwg.mxu0
        %v1592 = vadd.f32 %v1500, %v1588
        %v1593 = vadd.f32 %v1501, %v1590
        %s1594 = scalar_lea.vmem %s3, 8
        %v1595 = vld [vmem:[%s1594] sm:$0x3]
        %v1597 = vsel %vm1248, %v1595, 0
        %v1600 = vsel %vm1252, %v1226, 0
        %v1603 = vsel %vm1252, %v1227, 0
        %1605 = vmatprep.subr.mxu0 0.0
        %1606 = vmatpush1.msra.mxu0 0.0
        %1607 = vmatprep.subr.mxu0 0.0
        %1608 = vmatpush1.msra.mxu0 0.0
        %1609 = vmatprep.subr.mxu0 0.0
        %1610 = vmatpush1.msra.mxu0 0.0
        %1611 = vmatprep.subr.mxu0 0.0
        %1612 = vmatpush1.msra.mxu0 0.0
        %1613 = vmatprep.subr.mxu0 0.0
        %1614 = vmatpush1.msra.mxu0 0.0
        %1615 = vmatprep.subr.mxu0 0.0
        %1616 = vmatpush1.msra.mxu0 0.0
        %1617 = vmatprep.subr.mxu0 0.0
        %1618 = vmatpush1.msra.mxu0 0.0
        %1619 = vmatprep.subr.mxu0 0.0
        %1620 = vmatpush1.msra.mxu0 0.0
        %1621 = vmatprep.subr.mxu0 0.0
        %1622 = vmatpush1.msra.mxu0 0.0
        %1623 = vmatprep.subr.mxu0 0.0
        %1624 = vmatpush1.msra.mxu0 0.0
        %1625 = vmatprep.subr.mxu0 0.0
        %1626 = vmatpush1.msra.mxu0 0.0
        %1627 = vmatprep.subr.mxu0 0.0
        %1628 = vmatpush1.msra.mxu0 0.0
        %1629 = vmatprep.subr.mxu0 0.0
        %1630 = vmatpush1.msra.mxu0 0.0
        %1631 = vmatprep.subr.mxu0 0.0
        %1632 = vmatpush1.msra.mxu0 0.0
        %1633 = vmatprep.subr.mxu0 0.0
        %1634 = vmatpush1.msra.mxu0 0.0
        %1635 = vmatprep.subr.mxu0 %v1603
        %1636 = vmatpush1.msra.mxu0 %v1600
        %1637 = vmatprep.subr.mxu0 0.0
        %1638 = vmatpush2.msra.mxu0 0.0
        %1639 = vmatprep.subr.mxu0 0.0
        %1640 = vmatpush2.msra.mxu0 0.0
        %1641 = vmatprep.subr.mxu0 0.0
        %1642 = vmatpush2.msra.mxu0 0.0
        %1643 = vmatprep.subr.mxu0 0.0
        %1644 = vmatpush2.msra.mxu0 0.0
        %1645 = vmatprep.subr.mxu0 0.0
        %1646 = vmatpush2.msra.mxu0 0.0
        %1647 = vmatprep.subr.mxu0 0.0
        %1648 = vmatpush2.msra.mxu0 0.0
        %1649 = vmatprep.subr.mxu0 0.0
        %1650 = vmatpush2.msra.mxu0 0.0
        %1651 = vmatprep.subr.mxu0 0.0
        %1652 = vmatpush2.msra.mxu0 0.0
        %1653 = vmatprep.subr.mxu0 0.0
        %1654 = vmatpush2.msra.mxu0 0.0
        %1655 = vmatprep.subr.mxu0 0.0
        %1656 = vmatpush2.msra.mxu0 0.0
        %1657 = vmatprep.subr.mxu0 0.0
        %1658 = vmatpush2.msra.mxu0 0.0
        %1659 = vmatprep.subr.mxu0 0.0
        %1660 = vmatpush2.msra.mxu0 0.0
        %1661 = vmatprep.subr.mxu0 0.0
        %1662 = vmatpush2.msra.mxu0 0.0
        %1663 = vmatprep.subr.mxu0 0.0
        %1664 = vmatpush2.msra.mxu0 0.0
        %1665 = vmatprep.subr.mxu0 0.0
        %1666 = vmatpush2.msra.mxu0 0.0
        %1667 = vmatprep.subr.mxu0 0.0
        %1668 = vmatpush2.msra.mxu0 0.0
        %1669 = vmatprep.mubr.f32.mxu0 0.0
        %1670 = vmatmul.mubr.f32.gmra.mxu0 %v1597
        %v1671 = vpop.f32.mrf.mxu0
        %v1672 = vadd.f32 0.0, %v1671
        %v1673 = vpop.f32.mrf.mxu0
        %v1674 = vadd.f32 0.0, %v1673
        %1675 = vdwg.mxu0
        %v1676 = vadd.f32 %v1592, %v1672
        %v1677 = vadd.f32 %v1593, %v1674
        %1678 = vrot.lane.b32.xlu0 %v1226, 127
        %v1679 = vpop.permute.xlu0 %1678
        %1680 = vrot.lane.b32.xlu0 %v1227, 127
        %v1681 = vpop.permute.xlu0 %1680
        %v1682 = vsel %vm851, %v1679, %v1681
        %v1683 = vsel %vm851, %v1681, %v1679
        %v1684 = vmul.f32 %v1682, %v357
        %v1685 = vmul.f32 %v1683, %v358
        %s1686 = scalar_lea.vmem %s3, 10
        %v1687 = vld [vmem:[%s1686] sm:$0x3]
        %v1689 = vsel %vm1248, %v1687, 0
        %v1692 = vsel %vm1252, %v1684, 0
        %v1695 = vsel %vm1252, %v1685, 0
        %1697 = vmatprep.subr.mxu0 0.0
        %1698 = vmatpush1.msra.mxu0 0.0
        %1699 = vmatprep.subr.mxu0 0.0
        %1700 = vmatpush1.msra.mxu0 0.0
        %1701 = vmatprep.subr.mxu0 0.0
        %1702 = vmatpush1.msra.mxu0 0.0
        %1703 = vmatprep.subr.mxu0 0.0
        %1704 = vmatpush1.msra.mxu0 0.0
        %1705 = vmatprep.subr.mxu0 0.0
        %1706 = vmatpush1.msra.mxu0 0.0
        %1707 = vmatprep.subr.mxu0 0.0
        %1708 = vmatpush1.msra.mxu0 0.0
        %1709 = vmatprep.subr.mxu0 0.0
        %1710 = vmatpush1.msra.mxu0 0.0
        %1711 = vmatprep.subr.mxu0 0.0
        %1712 = vmatpush1.msra.mxu0 0.0
        %1713 = vmatprep.subr.mxu0 0.0
        %1714 = vmatpush1.msra.mxu0 0.0
        %1715 = vmatprep.subr.mxu0 0.0
        %1716 = vmatpush1.msra.mxu0 0.0
        %1717 = vmatprep.subr.mxu0 0.0
        %1718 = vmatpush1.msra.mxu0 0.0
        %1719 = vmatprep.subr.mxu0 0.0
        %1720 = vmatpush1.msra.mxu0 0.0
        %1721 = vmatprep.subr.mxu0 0.0
        %1722 = vmatpush1.msra.mxu0 0.0
        %1723 = vmatprep.subr.mxu0 0.0
        %1724 = vmatpush1.msra.mxu0 0.0
        %1725 = vmatprep.subr.mxu0 0.0
        %1726 = vmatpush1.msra.mxu0 0.0
        %1727 = vmatprep.subr.mxu0 %v1695
        %1728 = vmatpush1.msra.mxu0 %v1692
        %1729 = vmatprep.subr.mxu0 0.0
        %1730 = vmatpush2.msra.mxu0 0.0
        %1731 = vmatprep.subr.mxu0 0.0
        %1732 = vmatpush2.msra.mxu0 0.0
        %1733 = vmatprep.subr.mxu0 0.0
        %1734 = vmatpush2.msra.mxu0 0.0
        %1735 = vmatprep.subr.mxu0 0.0
        %1736 = vmatpush2.msra.mxu0 0.0
        %1737 = vmatprep.subr.mxu0 0.0
        %1738 = vmatpush2.msra.mxu0 0.0
        %1739 = vmatprep.subr.mxu0 0.0
        %1740 = vmatpush2.msra.mxu0 0.0
        %1741 = vmatprep.subr.mxu0 0.0
        %1742 = vmatpush2.msra.mxu0 0.0
        %1743 = vmatprep.subr.mxu0 0.0
        %1744 = vmatpush2.msra.mxu0 0.0
        %1745 = vmatprep.subr.mxu0 0.0
        %1746 = vmatpush2.msra.mxu0 0.0
        %1747 = vmatprep.subr.mxu0 0.0
        %1748 = vmatpush2.msra.mxu0 0.0
        %1749 = vmatprep.subr.mxu0 0.0
        %1750 = vmatpush2.msra.mxu0 0.0
        %1751 = vmatprep.subr.mxu0 0.0
        %1752 = vmatpush2.msra.mxu0 0.0
        %1753 = vmatprep.subr.mxu0 0.0
        %1754 = vmatpush2.msra.mxu0 0.0
        %1755 = vmatprep.subr.mxu0 0.0
        %1756 = vmatpush2.msra.mxu0 0.0
        %1757 = vmatprep.subr.mxu0 0.0
        %1758 = vmatpush2.msra.mxu0 0.0
        %1759 = vmatprep.subr.mxu0 0.0
        %1760 = vmatpush2.msra.mxu0 0.0
        %1761 = vmatprep.mubr.f32.mxu0 0.0
        %1762 = vmatmul.mubr.f32.gmra.mxu0 %v1689
        %v1763 = vpop.f32.mrf.mxu0
        %v1764 = vadd.f32 0.0, %v1763
        %v1765 = vpop.f32.mrf.mxu0
        %v1766 = vadd.f32 0.0, %v1765
        %1767 = vdwg.mxu0
        %v1768 = vadd.f32 %v1676, %v1764
        %v1769 = vadd.f32 %v1677, %v1766
        %1770 = vrot.lane.b32.xlu0 %v1226, 113
        %v1771 = vpop.permute.xlu0 %1770
        %1772 = vrot.lane.b32.xlu0 %v1227, 113
        %v1773 = vpop.permute.xlu0 %1772
        %v1774 = vsel %vm944, %v1771, %v1773
        %v1775 = vsel %vm944, %v1773, %v1771
        %v1776 = vmul.f32 %v1774, %v373
        %v1777 = vmul.f32 %v1775, %v374
        %s1778 = scalar_lea.vmem %s3, 12
        %v1779 = vld [vmem:[%s1778] sm:$0x3]
        %v1781 = vsel %vm1248, %v1779, 0
        %v1784 = vsel %vm1252, %v1776, 0
        %v1787 = vsel %vm1252, %v1777, 0
        %1789 = vmatprep.subr.mxu0 0.0
        %1790 = vmatpush1.msra.mxu0 0.0
        %1791 = vmatprep.subr.mxu0 0.0
        %1792 = vmatpush1.msra.mxu0 0.0
        %1793 = vmatprep.subr.mxu0 0.0
        %1794 = vmatpush1.msra.mxu0 0.0
        %1795 = vmatprep.subr.mxu0 0.0
        %1796 = vmatpush1.msra.mxu0 0.0
        %1797 = vmatprep.subr.mxu0 0.0
        %1798 = vmatpush1.msra.mxu0 0.0
        %1799 = vmatprep.subr.mxu0 0.0
        %1800 = vmatpush1.msra.mxu0 0.0
        %1801 = vmatprep.subr.mxu0 0.0
        %1802 = vmatpush1.msra.mxu0 0.0
        %1803 = vmatprep.subr.mxu0 0.0
        %1804 = vmatpush1.msra.mxu0 0.0
        %1805 = vmatprep.subr.mxu0 0.0
        %1806 = vmatpush1.msra.mxu0 0.0
        %1807 = vmatprep.subr.mxu0 0.0
        %1808 = vmatpush1.msra.mxu0 0.0
        %1809 = vmatprep.subr.mxu0 0.0
        %1810 = vmatpush1.msra.mxu0 0.0
        %1811 = vmatprep.subr.mxu0 0.0
        %1812 = vmatpush1.msra.mxu0 0.0
        %1813 = vmatprep.subr.mxu0 0.0
        %1814 = vmatpush1.msra.mxu0 0.0
        %1815 = vmatprep.subr.mxu0 0.0
        %1816 = vmatpush1.msra.mxu0 0.0
        %1817 = vmatprep.subr.mxu0 0.0
        %1818 = vmatpush1.msra.mxu0 0.0
        %1819 = vmatprep.subr.mxu0 %v1787
        %1820 = vmatpush1.msra.mxu0 %v1784
        %1821 = vmatprep.subr.mxu0 0.0
        %1822 = vmatpush2.msra.mxu0 0.0
        %1823 = vmatprep.subr.mxu0 0.0
        %1824 = vmatpush2.msra.mxu0 0.0
        %1825 = vmatprep.subr.mxu0 0.0
        %1826 = vmatpush2.msra.mxu0 0.0
        %1827 = vmatprep.subr.mxu0 0.0
        %1828 = vmatpush2.msra.mxu0 0.0
        %1829 = vmatprep.subr.mxu0 0.0
        %1830 = vmatpush2.msra.mxu0 0.0
        %1831 = vmatprep.subr.mxu0 0.0
        %1832 = vmatpush2.msra.mxu0 0.0
        %1833 = vmatprep.subr.mxu0 0.0
        %1834 = vmatpush2.msra.mxu0 0.0
        %1835 = vmatprep.subr.mxu0 0.0
        %1836 = vmatpush2.msra.mxu0 0.0
        %1837 = vmatprep.subr.mxu0 0.0
        %1838 = vmatpush2.msra.mxu0 0.0
        %1839 = vmatprep.subr.mxu0 0.0
        %1840 = vmatpush2.msra.mxu0 0.0
        %1841 = vmatprep.subr.mxu0 0.0
        %1842 = vmatpush2.msra.mxu0 0.0
        %1843 = vmatprep.subr.mxu0 0.0
        %1844 = vmatpush2.msra.mxu0 0.0
        %1845 = vmatprep.subr.mxu0 0.0
        %1846 = vmatpush2.msra.mxu0 0.0
        %1847 = vmatprep.subr.mxu0 0.0
        %1848 = vmatpush2.msra.mxu0 0.0
        %1849 = vmatprep.subr.mxu0 0.0
        %1850 = vmatpush2.msra.mxu0 0.0
        %1851 = vmatprep.subr.mxu0 0.0
        %1852 = vmatpush2.msra.mxu0 0.0
        %1853 = vmatprep.mubr.f32.mxu0 0.0
        %1854 = vmatmul.mubr.f32.gmra.mxu0 %v1781
        %v1855 = vpop.f32.mrf.mxu0
        %v1856 = vadd.f32 0.0, %v1855
        %v1857 = vpop.f32.mrf.mxu0
        %v1858 = vadd.f32 0.0, %v1857
        %1859 = vdwg.mxu0
        %v1860 = vadd.f32 %v1768, %v1856
        %v1861 = vadd.f32 %v1769, %v1858
        %1862 = vrot.lane.b32.xlu0 %v1226, 112
        %v1863 = vpop.permute.xlu0 %1862
        %1864 = vrot.lane.b32.xlu0 %v1227, 112
        %v1865 = vpop.permute.xlu0 %1864
        %v1866 = vsel %vm1037, %v1863, %v1865
        %v1867 = vsel %vm1037, %v1865, %v1863
        %v1868 = vmul.f32 %v1866, %v381
        %v1869 = vmul.f32 %v1867, %v382
        %s1870 = scalar_lea.vmem %s3, 14
        %v1871 = vld [vmem:[%s1870] sm:$0x3]
        %v1873 = vsel %vm1248, %v1871, 0
        %v1876 = vsel %vm1252, %v1868, 0
        %v1879 = vsel %vm1252, %v1869, 0
        %1881 = vmatprep.subr.mxu0 0.0
        %1882 = vmatpush1.msra.mxu0 0.0
        %1883 = vmatprep.subr.mxu0 0.0
        %1884 = vmatpush1.msra.mxu0 0.0
        %1885 = vmatprep.subr.mxu0 0.0
        %1886 = vmatpush1.msra.mxu0 0.0
        %1887 = vmatprep.subr.mxu0 0.0
        %1888 = vmatpush1.msra.mxu0 0.0
        %1889 = vmatprep.subr.mxu0 0.0
        %1890 = vmatpush1.msra.mxu0 0.0
        %1891 = vmatprep.subr.mxu0 0.0
        %1892 = vmatpush1.msra.mxu0 0.0
        %1893 = vmatprep.subr.mxu0 0.0
        %1894 = vmatpush1.msra.mxu0 0.0
        %1895 = vmatprep.subr.mxu0 0.0
        %1896 = vmatpush1.msra.mxu0 0.0
        %1897 = vmatprep.subr.mxu0 0.0
        %1898 = vmatpush1.msra.mxu0 0.0
        %1899 = vmatprep.subr.mxu0 0.0
        %1900 = vmatpush1.msra.mxu0 0.0
        %1901 = vmatprep.subr.mxu0 0.0
        %1902 = vmatpush1.msra.mxu0 0.0
        %1903 = vmatprep.subr.mxu0 0.0
        %1904 = vmatpush1.msra.mxu0 0.0
        %1905 = vmatprep.subr.mxu0 0.0
        %1906 = vmatpush1.msra.mxu0 0.0
        %1907 = vmatprep.subr.mxu0 0.0
        %1908 = vmatpush1.msra.mxu0 0.0
        %1909 = vmatprep.subr.mxu0 0.0
        %1910 = vmatpush1.msra.mxu0 0.0
        %1911 = vmatprep.subr.mxu0 %v1879
        %1912 = vmatpush1.msra.mxu0 %v1876
        %1913 = vmatprep.subr.mxu0 0.0
        %1914 = vmatpush2.msra.mxu0 0.0
        %1915 = vmatprep.subr.mxu0 0.0
        %1916 = vmatpush2.msra.mxu0 0.0
        %1917 = vmatprep.subr.mxu0 0.0
        %1918 = vmatpush2.msra.mxu0 0.0
        %1919 = vmatprep.subr.mxu0 0.0
        %1920 = vmatpush2.msra.mxu0 0.0
        %1921 = vmatprep.subr.mxu0 0.0
        %1922 = vmatpush2.msra.mxu0 0.0
        %1923 = vmatprep.subr.mxu0 0.0
        %1924 = vmatpush2.msra.mxu0 0.0
        %1925 = vmatprep.subr.mxu0 0.0
        %1926 = vmatpush2.msra.mxu0 0.0
        %1927 = vmatprep.subr.mxu0 0.0
        %1928 = vmatpush2.msra.mxu0 0.0
        %1929 = vmatprep.subr.mxu0 0.0
        %1930 = vmatpush2.msra.mxu0 0.0
        %1931 = vmatprep.subr.mxu0 0.0
        %1932 = vmatpush2.msra.mxu0 0.0
        %1933 = vmatprep.subr.mxu0 0.0
        %1934 = vmatpush2.msra.mxu0 0.0
        %1935 = vmatprep.subr.mxu0 0.0
        %1936 = vmatpush2.msra.mxu0 0.0
        %1937 = vmatprep.subr.mxu0 0.0
        %1938 = vmatpush2.msra.mxu0 0.0
        %1939 = vmatprep.subr.mxu0 0.0
        %1940 = vmatpush2.msra.mxu0 0.0
        %1941 = vmatprep.subr.mxu0 0.0
        %1942 = vmatpush2.msra.mxu0 0.0
        %1943 = vmatprep.subr.mxu0 0.0
        %1944 = vmatpush2.msra.mxu0 0.0
        %1945 = vmatprep.mubr.f32.mxu0 0.0
        %1946 = vmatmul.mubr.f32.gmra.mxu0 %v1873
        %v1947 = vpop.f32.mrf.mxu0
        %v1948 = vadd.f32 0.0, %v1947
        %v1949 = vpop.f32.mrf.mxu0
        %v1950 = vadd.f32 0.0, %v1949
        %1951 = vdwg.mxu0
        %v1952 = vadd.f32 %v1860, %v1948
        %v1953 = vadd.f32 %v1861, %v1950
        %1954 = vrot.lane.b32.xlu0 %v1226, 111
        %v1955 = vpop.permute.xlu0 %1954
        %1956 = vrot.lane.b32.xlu0 %v1227, 111
        %v1957 = vpop.permute.xlu0 %1956
        %v1958 = vsel %vm1130, %v1955, %v1957
        %v1959 = vsel %vm1130, %v1957, %v1955
        %v1960 = vmul.f32 %v1958, %v389
        %v1961 = vmul.f32 %v1959, %v390
        %s1962 = scalar_lea.vmem %s3, 16
        %v1963 = vld [vmem:[%s1962] sm:$0x3]
        %v1965 = vsel %vm1248, %v1963, 0
        %v1968 = vsel %vm1252, %v1960, 0
        %v1971 = vsel %vm1252, %v1961, 0
        %1973 = vmatprep.subr.mxu0 0.0
        %1974 = vmatpush1.msra.mxu0 0.0
        %1975 = vmatprep.subr.mxu0 0.0
        %1976 = vmatpush1.msra.mxu0 0.0
        %1977 = vmatprep.subr.mxu0 0.0
        %1978 = vmatpush1.msra.mxu0 0.0
        %1979 = vmatprep.subr.mxu0 0.0
        %1980 = vmatpush1.msra.mxu0 0.0
        %1981 = vmatprep.subr.mxu0 0.0
        %1982 = vmatpush1.msra.mxu0 0.0
        %1983 = vmatprep.subr.mxu0 0.0
        %1984 = vmatpush1.msra.mxu0 0.0
        %1985 = vmatprep.subr.mxu0 0.0
        %1986 = vmatpush1.msra.mxu0 0.0
        %1987 = vmatprep.subr.mxu0 0.0
        %1988 = vmatpush1.msra.mxu0 0.0
        %1989 = vmatprep.subr.mxu0 0.0
        %1990 = vmatpush1.msra.mxu0 0.0
        %1991 = vmatprep.subr.mxu0 0.0
        %1992 = vmatpush1.msra.mxu0 0.0
        %1993 = vmatprep.subr.mxu0 0.0
        %1994 = vmatpush1.msra.mxu0 0.0
        %1995 = vmatprep.subr.mxu0 0.0
        %1996 = vmatpush1.msra.mxu0 0.0
        %1997 = vmatprep.subr.mxu0 0.0
        %1998 = vmatpush1.msra.mxu0 0.0
        %1999 = vmatprep.subr.mxu0 0.0
        %2000 = vmatpush1.msra.mxu0 0.0
        %2001 = vmatprep.subr.mxu0 0.0
        %2002 = vmatpush1.msra.mxu0 0.0
        %2003 = vmatprep.subr.mxu0 %v1971
        %2004 = vmatpush1.msra.mxu0 %v1968
        %2005 = vmatprep.subr.mxu0 0.0
        %2006 = vmatpush2.msra.mxu0 0.0
        %2007 = vmatprep.subr.mxu0 0.0
        %2008 = vmatpush2.msra.mxu0 0.0
        %2009 = vmatprep.subr.mxu0 0.0
        %2010 = vmatpush2.msra.mxu0 0.0
        %2011 = vmatprep.subr.mxu0 0.0
        %2012 = vmatpush2.msra.mxu0 0.0
        %2013 = vmatprep.subr.mxu0 0.0
        %2014 = vmatpush2.msra.mxu0 0.0
        %2015 = vmatprep.subr.mxu0 0.0
        %2016 = vmatpush2.msra.mxu0 0.0
        %2017 = vmatprep.subr.mxu0 0.0
        %2018 = vmatpush2.msra.mxu0 0.0
        %2019 = vmatprep.subr.mxu0 0.0
        %2020 = vmatpush2.msra.mxu0 0.0
        %2021 = vmatprep.subr.mxu0 0.0
        %2022 = vmatpush2.msra.mxu0 0.0
        %2023 = vmatprep.subr.mxu0 0.0
        %2024 = vmatpush2.msra.mxu0 0.0
        %2025 = vmatprep.subr.mxu0 0.0
        %2026 = vmatpush2.msra.mxu0 0.0
        %2027 = vmatprep.subr.mxu0 0.0
        %2028 = vmatpush2.msra.mxu0 0.0
        %2029 = vmatprep.subr.mxu0 0.0
        %2030 = vmatpush2.msra.mxu0 0.0
        %2031 = vmatprep.subr.mxu0 0.0
        %2032 = vmatpush2.msra.mxu0 0.0
        %2033 = vmatprep.subr.mxu0 0.0
        %2034 = vmatpush2.msra.mxu0 0.0
        %2035 = vmatprep.subr.mxu0 0.0
        %2036 = vmatpush2.msra.mxu0 0.0
        %2037 = vmatprep.mubr.f32.mxu0 0.0
        %2038 = vmatmul.mubr.f32.gmra.mxu0 %v1965
        %v2039 = vpop.f32.mrf.mxu0
        %v2040 = vadd.f32 0.0, %v2039
        %v2041 = vpop.f32.mrf.mxu0
        %v2042 = vadd.f32 0.0, %v2041
        %2043 = vdwg.mxu0
        %v2044 = vadd.f32 %v1952, %v2040
        %v2045 = vadd.f32 %v1953, %v2042
        %2047 = vset.pattern.permute.xlu0 0
        %2048 = vperm.xlu0 %2047, %v1228
        %v2049 = vpop.permute.xlu0 %2048
        %v2051 = vadd.f32 %v2044, %v2049
        %v2052 = vadd.f32 %v2045, %v2049
        %v2053 = vmax.f32 %v2051, 0.0
        %v2054 = vmax.f32 %v2052, 0.0
        %v2055 = vld [vmem:[%s5] sm:$0xf]
        %v2056 = vld [vmem:[%s6] sm:$0xf]
        %2058 = vset.pattern.permute.xlu0 0
        %2059 = vperm.xlu0 %2058, %v2056
        %v2060 = vpop.permute.xlu0 %2059
        %v2063 = vsel %vm1248, %v2055, 0
        %v2066 = vsel %vm1252, %v2053, 0
        %v2069 = vsel %vm1252, %v2054, 0
        %2071 = vmatprep.subr.mxu0 0.0
        %2072 = vmatpush1.msra.mxu0 0.0
        %2073 = vmatprep.subr.mxu0 0.0
        %2074 = vmatpush1.msra.mxu0 0.0
        %2075 = vmatprep.subr.mxu0 0.0
        %2076 = vmatpush1.msra.mxu0 0.0
        %2077 = vmatprep.subr.mxu0 0.0
        %2078 = vmatpush1.msra.mxu0 0.0
        %2079 = vmatprep.subr.mxu0 0.0
        %2080 = vmatpush1.msra.mxu0 0.0
        %2081 = vmatprep.subr.mxu0 0.0
        %2082 = vmatpush1.msra.mxu0 0.0
        %2083 = vmatprep.subr.mxu0 0.0
        %2084 = vmatpush1.msra.mxu0 0.0
        %2085 = vmatprep.subr.mxu0 0.0
        %2086 = vmatpush1.msra.mxu0 0.0
        %2087 = vmatprep.subr.mxu0 0.0
        %2088 = vmatpush1.msra.mxu0 0.0
        %2089 = vmatprep.subr.mxu0 0.0
        %2090 = vmatpush1.msra.mxu0 0.0
        %2091 = vmatprep.subr.mxu0 0.0
        %2092 = vmatpush1.msra.mxu0 0.0
        %2093 = vmatprep.subr.mxu0 0.0
        %2094 = vmatpush1.msra.mxu0 0.0
        %2095 = vmatprep.subr.mxu0 0.0
        %2096 = vmatpush1.msra.mxu0 0.0
        %2097 = vmatprep.subr.mxu0 0.0
        %2098 = vmatpush1.msra.mxu0 0.0
        %2099 = vmatprep.subr.mxu0 0.0
        %2100 = vmatpush1.msra.mxu0 0.0
        %2101 = vmatprep.subr.mxu0 %v2069
        %2102 = vmatpush1.msra.mxu0 %v2066
        %2103 = vmatprep.subr.mxu0 0.0
        %2104 = vmatpush2.msra.mxu0 0.0
        %2105 = vmatprep.subr.mxu0 0.0
        %2106 = vmatpush2.msra.mxu0 0.0
        %2107 = vmatprep.subr.mxu0 0.0
        %2108 = vmatpush2.msra.mxu0 0.0
        %2109 = vmatprep.subr.mxu0 0.0
        %2110 = vmatpush2.msra.mxu0 0.0
        %2111 = vmatprep.subr.mxu0 0.0
        %2112 = vmatpush2.msra.mxu0 0.0
        %2113 = vmatprep.subr.mxu0 0.0
        %2114 = vmatpush2.msra.mxu0 0.0
        %2115 = vmatprep.subr.mxu0 0.0
        %2116 = vmatpush2.msra.mxu0 0.0
        %2117 = vmatprep.subr.mxu0 0.0
        %2118 = vmatpush2.msra.mxu0 0.0
        %2119 = vmatprep.subr.mxu0 0.0
        %2120 = vmatpush2.msra.mxu0 0.0
        %2121 = vmatprep.subr.mxu0 0.0
        %2122 = vmatpush2.msra.mxu0 0.0
        %2123 = vmatprep.subr.mxu0 0.0
        %2124 = vmatpush2.msra.mxu0 0.0
        %2125 = vmatprep.subr.mxu0 0.0
        %2126 = vmatpush2.msra.mxu0 0.0
        %2127 = vmatprep.subr.mxu0 0.0
        %2128 = vmatpush2.msra.mxu0 0.0
        %2129 = vmatprep.subr.mxu0 0.0
        %2130 = vmatpush2.msra.mxu0 0.0
        %2131 = vmatprep.subr.mxu0 0.0
        %2132 = vmatpush2.msra.mxu0 0.0
        %2133 = vmatprep.subr.mxu0 0.0
        %2134 = vmatpush2.msra.mxu0 0.0
        %2135 = vmatprep.mubr.f32.mxu0 0.0
        %2136 = vmatmul.mubr.f32.gmra.mxu0 %v2063
        %v2137 = vpop.f32.mrf.mxu0
        %v2138 = vadd.f32 %v2060, %v2137
        %v2139 = vpop.f32.mrf.mxu0
        %v2140 = vadd.f32 %v2060, %v2139
        %2141 = vdwg.mxu0
        %v2142 = vxor.u32 %v2138, 2147483648
        %v2143 = vxor.u32 %v2140, 2147483648
        %v2144 = vmul.f32 %v2142, 1.442695
        %v2145 = vpow.pop %v2144
        %v2146 = vmul.f32 %v2143, 1.442695
        %v2147 = vpow.pop %v2146
        %v2148 = vadd.f32 %v2145, 1.0
        %v2149 = vadd.f32 %v2147, 1.0
        %v2150 = vrcp.pop %v2148
        %v2151 = vmul.f32 1.0, %v2150
        %v2152 = vrcp.pop %v2149
        %v2153 = vmul.f32 1.0, %v2152
        %v2156 = vcombine.low %v2151, %v2153
        %2158 = vst [vmem:[%s272] sm:$0xff] %v2156
        %s2159 = sand.u32 %s181, 1
        %s2160 = scalar_lea.sflag [#allocation3], %s2159
        %s2161 = sand.u32 %s181, 1
        %s2162 = smul.addr %s2161, 8
        %s2163 = scalar_lea.vmem [#allocation2], %s2162
        // Predicated region
        $region49: #{tpu_custom_call.1} parent=47 // pred_check
          %p2164 = pneg %p191
        $region50: #{tpu_custom_call.1} parent=47 // pred_check_branch
          %2166 = sbr.rel (%p2164) target = $region52
        $region51: #{tpu_custom_call.1} parent=47 // pred_region
          %s2167 = smul.u32 2, %s21
          %s2169 = ssub.s32 128, 128
          %2170 = vsyncadd %s2160, %s2169
          %s2171 = smul.addr %s2167, 64
          %s2172 = scalar_lea.hbm %s7, %s2171
          %s2174 = sshll.u32 %s2163, 4
          %s2175 = int_to_ptr.vmem [resolvable:$true] %s2174
          %2177 = dma.vmem_to_hbm [thread:$0]  %s2175, 128, %s2172, %s2160
        $region52: #{tpu_custom_call.1} parent=47 // pred_fallthru
          _
      $region48: #{tpu_custom_call.1} parent=5 // pred_fallthru
        _
      %p2178 = scmp.le.s32.totalorder 2, %s16
      // Predicated region
      $region53: #{tpu_custom_call.1} parent=5 // pred_check
        %p2179 = pneg %p2178
      $region54: #{tpu_custom_call.1} parent=5 // pred_check_branch
        %2181 = sbr.rel (%p2179) target = $region56
      $region55: #{tpu_custom_call.1} parent=5 // pred_region
        %s2182 = ssub.s32 %s16, 2
        // Predicated region
        $region57: #{tpu_custom_call.1} parent=55 // pred_check
          %p2183 = pneg %p197
        $region58: #{tpu_custom_call.1} parent=55 // pred_check_branch
          %2185 = sbr.rel (%p2183) target = $region60
        $region59: #{tpu_custom_call.1} parent=55 // pred_region
          %s2186 = sand.u32 %s182, 1
          %s2187 = scalar_lea.sflag [#allocation3], %s2186
          %s2188 = sand.u32 %s182, 1
          %s2189 = smul.addr %s2188, 8
          %s2190 = scalar_lea.vmem [#allocation2], %s2189
          %2191 = dma.done %s2187, 128
        $region60: #{tpu_custom_call.1} parent=55 // pred_fallthru
          _
      $region56: #{tpu_custom_call.1} parent=5 // pred_fallthru
        _
    $region6: #{tpu_custom_call.1} parent=1 // loop_footer
      %s20 = sadd.s32 1, %s16
    $region7: #{tpu_custom_call.1} parent=1 // loop_footer_branch
      %15 = sbr.rel target = $region3
    $region8: #{tpu_custom_call.1} parent=1 // loop_exit
      _
    %2192 = vsyncpa [#allocation3], 1
    %s2193 = scalar_lea.sflag [#allocation3], 1
    %2194 = vsyncpa %s2193, 1

</llo_original>
